<compile_context>
chip_gen: v6e
topology: v6e:2x2x1
jax: 0.10.0
libtpu: 0.0.40
codegen_flags: <defaults>
</compile_context>

<pallas_src>
from functools import partial

import jax
import jax.numpy as jnp
from jax.experimental import pallas as pl
from jax.experimental.pallas import tpu as pltpu


_NEG_BIG = -1e30  # finite "-inf" for masked softmax lanes
_OUT_LANES = 128  # lane-dense output slab width


def _round_up(n, m):
    return ((n + m - 1) // m) * m


# ------------------------------- kernel -----------------------------------

def _actor_dc_kernel(action_dim, half_max_action,
                     s_ref,
                     w1, b1, w2, b2, w3, b3,
                     wh1, bh1, wh2, bh2,
                     out_ref):
    f32 = jnp.float32
    x = s_ref[...]  # bf16 (cast in wrapper)

    # shared trunk: 3 x (Linear -> ReLU); bf16 weights, f32 accumulation.
    h = jnp.maximum(
        jnp.dot(x, w1[...], preferred_element_type=f32) + b1[...], 0.0)
    h = jnp.maximum(
        jnp.dot(h.astype(w2.dtype), w2[...], preferred_element_type=f32) + b2[...], 0.0)
    h = jnp.maximum(
        jnp.dot(h.astype(w3.dtype), w3[...], preferred_element_type=f32) + b3[...], 0.0)

    # fused head hidden layer: lanes [0:256] = discrete branch (ReLU),
    #                          lanes [256:512] = continuous branch (tanh).
    # 256 is a 128-lane-aligned boundary -> static slices are layout-free and
    # tanh only runs on the 256 continuous lanes (half the EUP work).
    z = jnp.dot(h.astype(wh1.dtype), wh1[...], preferred_element_type=f32) + bh1[...]
    g_d = jnp.maximum(z[:, :256], 0.0)
    g_c = jnp.tanh(z[:, 256:])
    g = jnp.concatenate([g_d, g_c], axis=1)

    # fused (block-diagonal, zero-padded) final projection:
    #   lanes [0:A]           = discrete logits
    #   lanes [A:3A]          = continuous pre-tanh
    #   lanes [3A:_OUT_LANES] = zero padding
    y = jnp.dot(g.astype(wh2.dtype), wh2[...], preferred_element_type=f32) + bh2[...]
    col = jax.lax.broadcasted_iota(jnp.int32, y.shape, 1)
    is_logit = col < action_dim
    is_cont = jnp.logical_and(col >= action_dim, col < 3 * action_dim)

    # softmax over the logit lanes (masked max / exp / sum).
    logits = jnp.where(is_logit, y, _NEG_BIG)
    m = jnp.max(logits, axis=-1, keepdims=True)
    e = jnp.where(is_logit, jnp.exp(logits - m), 0.0)
    denom = jnp.sum(e, axis=-1, keepdims=True)
    r = pl.reciprocal(denom, approx=True)   # EUP slot
    r = r * (2.0 - denom * r)               # one Newton step -> ~f32 accuracy
    probs = e * r                           # zero outside logit lanes already

    # continuous head: max_action * (tanh(.) + 1) / 2  (0.5 folded into constant)
    mean = half_max_action * (jnp.tanh(y) + 1.0)

    out_ref[...] = probs + jnp.where(is_cont, mean, 0.0)


# --------------------------- wrapper / packing -----------------------------

def pack_actor_dc_params(p, action_dim):
    """Pack the f32 reference params into the fused, bf16 kernel layout."""
    A = action_dim
    assert 3 * A <= _OUT_LANES, "action_dim too large for single output slab"
    # TODO(synk): for 3*action_dim > 128 widen _OUT_LANES to the next /128 multiple.
    wdt = jnp.bfloat16
    packed = {
        "w1": p["w1"].astype(wdt), "b1": p["b1"],
        "w2": p["w2"].astype(wdt), "b2": p["b2"],
        "w3": p["w3"].astype(wdt), "b3": p["b3"],
        # fused head first layers: [256, 512] = [wd1 | wc1]
        "wh1": jnp.concatenate([p["wd1"], p["wc1"]], axis=1).astype(wdt),
        "bh1": jnp.concatenate([p["bd1"], p["bc1"]], axis=1),
    }
    wh2 = jnp.zeros((512, _OUT_LANES), jnp.float32)
    wh2 = wh2.at[0:256, 0:A].set(p["wd2"])
    wh2 = wh2.at[256:512, A:3 * A].set(p["wc2"])
    bh2 = jnp.zeros((1, _OUT_LANES), jnp.float32)
    bh2 = bh2.at[0, 0:A].set(p["bd2"][0])
    bh2 = bh2.at[0, A:3 * A].set(p["bc2"][0])
    packed["wh2"] = wh2.astype(wdt)
    packed["bh2"] = bh2
    return packed


def actor_dc_forward(s, packed, action_dim, max_action, tile_b=1024):
    """Full ActorDC forward: one pallas_call, grid over batch rows."""
    B, state_dim = s.shape
    A = action_dim

    # batch tile: multiple of 8 sublanes.  Large default (1024) amortizes the
    # ~0.35 us per-grid-step overhead; for mid-size batches we cap TB so the
    # grid has >=2 parallel steps (lets v7x's 2 TensorCores both work).
    TB = min(tile_b, _round_up(pl.cdiv(max(B, 1), 2), 8))
    B_pad = _round_up(B, TB)

    # cast activations to bf16 up front (kernel consumes bf16; halves input DMA)
    s = s.astype(jnp.bfloat16)
    if B_pad != B:
        s = jnp.pad(s, ((0, B_pad - B), (0, 0)))
    grid = (B_pad // TB,)

    args = (s,
            packed["w1"], packed["b1"],
            packed["w2"], packed["b2"],
            packed["w3"], packed["b3"],
            packed["wh1"], packed["bh1"],
            packed["wh2"], packed["bh2"])

    def const_spec(a):  # whole array, constant index_map -> resident across steps
        return pl.BlockSpec(a.shape, lambda i: (0, 0))

    in_specs = [pl.BlockSpec((TB, state_dim), lambda i: (i, 0))]
    in_specs += [const_spec(a) for a in args[1:]]

    out = pl.pallas_call(
        partial(_actor_dc_kernel, A, 0.5 * float(max_action)),
        out_shape=jax.ShapeDtypeStruct((B_pad, _OUT_LANES), jnp.float32),
        grid=grid,
        in_specs=in_specs,
        out_specs=pl.BlockSpec((TB, _OUT_LANES), lambda i: (i, 0)),
        compiler_params=pltpu.CompilerParams(
            dimension_semantics=("parallel",)),
    )(*args)

    a_prob = out[:B, 0:A]
    mean = out[:B, A:3 * A]
    return a_prob, mean


# ----------------------------- parameter init -----------------------------

def _kaiming(key, fan_in, fan_out):
    # kaiming_normal_(nonlinearity='relu'): std = sqrt(2 / fan_in); stored [in, out]
    std = (2.0 / fan_in) ** 0.5
    return std * jax.random.normal(key, (fan_in, fan_out), dtype=jnp.float32)


def _orthogonal(key, fan_in, fan_out, gain):
    # orthogonal init (gain-scaled), stored [in, out]
    a = jax.random.normal(key, (fan_in, fan_out), dtype=jnp.float32)
    if fan_in >= fan_out:
        q, r = jnp.linalg.qr(a)
    else:
        q, r = jnp.linalg.qr(a.T)
        q = q.T
    q = q * jnp.sign(jnp.diagonal(r))[: q.shape[-1]]
    return gain * q[:fan_in, :fan_out].astype(jnp.float32)


def init_actor_dc_params(key, state_dim, action_dim):
    ks = jax.random.split(key, 7)
    p = {}
    # comm trunk (kaiming, zero bias)
    p["w1"], p["b1"] = _kaiming(ks[0], state_dim, 512), jnp.zeros((1, 512), jnp.float32)
    p["w2"], p["b2"] = _kaiming(ks[1], 512, 512), jnp.zeros((1, 512), jnp.float32)
    p["w3"], p["b3"] = _kaiming(ks[2], 512, 256), jnp.zeros((1, 256), jnp.float32)
    # discrete head (kaiming, zero bias); both layers take 256 inputs per __init__
    p["wd1"], p["bd1"] = _kaiming(ks[3], 256, 256), jnp.zeros((1, 256), jnp.float32)
    p["wd2"], p["bd2"] = _kaiming(ks[4], 256, action_dim), jnp.zeros((1, action_dim), jnp.float32)
    # continuous head (orthogonal gain=0.01, zero bias)
    p["wc1"], p["bc1"] = _orthogonal(ks[5], 256, 256, 0.01), jnp.zeros((1, 256), jnp.float32)
    p["wc2"], p["bc2"] = _orthogonal(ks[6], 256, 2 * action_dim, 0.01), jnp.zeros((1, 2 * action_dim), jnp.float32)
    return p


# ------------------------------- references -------------------------------

def _reference_forward_f32(s, p, max_action):
    h = jax.nn.relu(s @ p["w1"] + p["b1"])
    h = jax.nn.relu(h @ p["w2"] + p["b2"])
    h = jax.nn.relu(h @ p["w3"] + p["b3"])
    a = jax.nn.relu(h @ p["wd1"] + p["bd1"])
    a_prob = jax.nn.softmax(a @ p["wd2"] + p["bd2"], axis=1)
    q = jnp.tanh(h @ p["wc1"] + p["bc1"])
    mean = max_action * (jnp.tanh(q @ p["wc2"] + p["bc2"]) + 1.0) / 2.0
    return a_prob, mean


def _reference_forward_bf16(s, p, max_action):
    # same math as the kernel (bf16 operands, f32 accumulation / elementwise)
    def lin(x, w, b):
        return jnp.dot(x.astype(jnp.bfloat16), w.astype(jnp.bfloat16),
                       preferred_element_type=jnp.float32) + b
    h = jax.nn.relu(lin(s, p["w1"], p["b1"]))
    h = jax.nn.relu(lin(h, p["w2"], p["b2"]))
    h = jax.nn.relu(lin(h, p["w3"], p["b3"]))
    a = jax.nn.relu(lin(h, p["wd1"], p["bd1"]))
    a_prob = jax.nn.softmax(lin(a, p["wd2"], p["bd2"]), axis=1)
    q = jnp.tanh(lin(h, p["wc1"], p["bc1"]))
    mean = max_action * (jnp.tanh(lin(q, p["wc2"], p["bc2"])) + 1.0) / 2.0
    return a_prob, mean


if __name__ == "__main__":
    # small, deterministic example shapes
    batch, state_dim, action_dim, max_action = 2, 32, 4, 1.0

    key = jax.random.PRNGKey(0)
    k_params, k_in1, k_in2 = jax.random.split(key, 3)
    params = init_actor_dc_params(k_params, state_dim, action_dim)
    packed = pack_actor_dc_params(params, action_dim)

    # --- small-batch check (single grid step) ---
    s = jax.random.normal(k_in1, (batch, state_dim), dtype=jnp.float32)
    a_prob, mean = actor_dc_forward(s, packed, action_dim, max_action)
    jax.block_until_ready((a_prob, mean))

    assert a_prob.shape == (batch, action_dim)
    assert mean.shape == (batch, 2 * action_dim)

    a_bf, m_bf = _reference_forward_bf16(s, params, max_action)
    a_f32, m_f32 = _reference_forward_f32(s, params, max_action)
    # exact-math check vs a reference using identical bf16 weights/activations
    assert jnp.allclose(a_prob, a_bf, atol=2e-3, rtol=2e-3)
    assert jnp.allclose(mean, m_bf, atol=2e-3, rtol=2e-3)
    # loose check vs full-f32 math (bf16 weights perturb outputs ~1e-2)
    assert jnp.allclose(a_prob, a_f32, atol=5e-2, rtol=5e-2)
    assert jnp.allclose(mean, m_f32, atol=5e-2, rtol=5e-2)
    assert jnp.allclose(jnp.sum(a_prob, axis=1), 1.0, atol=1e-4)

    # --- larger batch exercising the tiled (>=2-step) grid + padding path ---
    B2 = 260
    s2 = jax.random.normal(k_in2, (B2, state_dim), dtype=jnp.float32)
    a2, m2 = actor_dc_forward(s2, packed, action_dim, max_action)
    jax.block_until_ready((a2, m2))
    a2_bf, m2_bf = _reference_forward_bf16(s2, params, max_action)
    assert a2.shape == (B2, action_dim) and m2.shape == (B2, 2 * action_dim)
    assert jnp.allclose(a2, a2_bf, atol=2e-3, rtol=2e-3)
    assert jnp.allclose(m2, m2_bf, atol=2e-3, rtol=2e-3)
    assert jnp.allclose(jnp.sum(a2, axis=1), 1.0, atol=1e-4)

    print("KERNEL_OK")
</pallas_src>

<mosaic_0001>
module attributes {stable_mosaic.version = 11 : i64} {
  func.func @_actor_dc_kernel(%arg0: i32, %arg1: memref<8x32xbf16, #tpu.memory_space<vmem>>, %arg2: memref<32x512xbf16, #tpu.memory_space<vmem>>, %arg3: memref<1x512xf32, #tpu.memory_space<vmem>>, %arg4: memref<512x512xbf16, #tpu.memory_space<vmem>>, %arg5: memref<1x512xf32, #tpu.memory_space<vmem>>, %arg6: memref<512x256xbf16, #tpu.memory_space<vmem>>, %arg7: memref<1x256xf32, #tpu.memory_space<vmem>>, %arg8: memref<256x512xbf16, #tpu.memory_space<vmem>>, %arg9: memref<1x512xf32, #tpu.memory_space<vmem>>, %arg10: memref<512x128xbf16, #tpu.memory_space<vmem>>, %arg11: memref<1x128xf32, #tpu.memory_space<vmem>>, %arg12: memref<8x128xf32, #tpu.memory_space<vmem>>) attributes {dimension_semantics = [#tpu.dimension_semantics<parallel>], iteration_bounds = array<i64: 1>, scalar_prefetch = 0 : i64, scratch_operands = 0 : i64, tpu.core_type = #tpu.core_type<tc>, window_params = [{transform_indices = @transform_0, window_bounds = array<i64: 8, 32>}, {pipeline_mode = #tpu.pipeline_mode<synchronous>, transform_indices = @transform_1, window_bounds = array<i64: 32, 512>}, {pipeline_mode = #tpu.pipeline_mode<synchronous>, transform_indices = @transform_2, window_bounds = array<i64: 1, 512>}, {pipeline_mode = #tpu.pipeline_mode<synchronous>, transform_indices = @transform_3, window_bounds = array<i64: 512, 512>}, {pipeline_mode = #tpu.pipeline_mode<synchronous>, transform_indices = @transform_4, window_bounds = array<i64: 1, 512>}, {pipeline_mode = #tpu.pipeline_mode<synchronous>, transform_indices = @transform_5, window_bounds = array<i64: 512, 256>}, {pipeline_mode = #tpu.pipeline_mode<synchronous>, transform_indices = @transform_6, window_bounds = array<i64: 1, 256>}, {pipeline_mode = #tpu.pipeline_mode<synchronous>, transform_indices = @transform_7, window_bounds = array<i64: 256, 512>}, {pipeline_mode = #tpu.pipeline_mode<synchronous>, transform_indices = @transform_8, window_bounds = array<i64: 1, 512>}, {pipeline_mode = #tpu.pipeline_mode<synchronous>, transform_indices = @transform_9, window_bounds = array<i64: 512, 128>}, {pipeline_mode = #tpu.pipeline_mode<synchronous>, transform_indices = @transform_10, window_bounds = array<i64: 1, 128>}, {transform_indices = @transform_11, window_bounds = array<i64: 8, 128>}]} {
    %c0 = arith.constant 0 : index
    %c0_0 = arith.constant 0 : index
    %0 = vector.load %arg1[%c0, %c0_0] : memref<8x32xbf16, #tpu.memory_space<vmem>>, vector<8x32xbf16>
    %c0_1 = arith.constant 0 : index
    %c0_2 = arith.constant 0 : index
    %1 = vector.load %arg2[%c0_1, %c0_2] : memref<32x512xbf16, #tpu.memory_space<vmem>>, vector<32x512xbf16>
    %cst = arith.constant dense<0.000000e+00> : vector<8x512xf32>
    %2 = tpu.matmul %0, %1, %cst {dimension_numbers = #tpu.dot_dimension_numbers<[1], [0], [0], [1], [0, 0, 1, 1], [], []>} : vector<8x32xbf16>, vector<32x512xbf16>, vector<8x512xf32> -> vector<8x512xf32>
    %c0_3 = arith.constant 0 : index
    %c0_4 = arith.constant 0 : index
    %3 = vector.load %arg3[%c0_3, %c0_4] : memref<1x512xf32, #tpu.memory_space<vmem>>, vector<1x512xf32>
    %4 = vector.broadcast %3 : vector<1x512xf32> to vector<8x512xf32>
    %5 = arith.addf %2, %4 : vector<8x512xf32>
    %cst_5 = arith.constant 0.000000e+00 : f32
    %6 = vector.broadcast %cst_5 : f32 to vector<8x512xf32>
    %7 = arith.maximumf %5, %6 : vector<8x512xf32>
    %8 = arith.truncf %7 : vector<8x512xf32> to vector<8x512xbf16>
    %c0_6 = arith.constant 0 : index
    %c0_7 = arith.constant 0 : index
    %9 = vector.load %arg4[%c0_6, %c0_7] : memref<512x512xbf16, #tpu.memory_space<vmem>>, vector<512x512xbf16>
    %cst_8 = arith.constant dense<0.000000e+00> : vector<8x512xf32>
    %10 = tpu.matmul %8, %9, %cst_8 {dimension_numbers = #tpu.dot_dimension_numbers<[1], [0], [0], [1], [0, 0, 1, 1], [], []>} : vector<8x512xbf16>, vector<512x512xbf16>, vector<8x512xf32> -> vector<8x512xf32>
    %c0_9 = arith.constant 0 : index
    %c0_10 = arith.constant 0 : index
    %11 = vector.load %arg5[%c0_9, %c0_10] : memref<1x512xf32, #tpu.memory_space<vmem>>, vector<1x512xf32>
    %12 = vector.broadcast %11 : vector<1x512xf32> to vector<8x512xf32>
    %13 = arith.addf %10, %12 : vector<8x512xf32>
    %cst_11 = arith.constant 0.000000e+00 : f32
    %14 = vector.broadcast %cst_11 : f32 to vector<8x512xf32>
    %15 = arith.maximumf %13, %14 : vector<8x512xf32>
    %16 = arith.truncf %15 : vector<8x512xf32> to vector<8x512xbf16>
    %c0_12 = arith.constant 0 : index
    %c0_13 = arith.constant 0 : index
    %17 = vector.load %arg6[%c0_12, %c0_13] : memref<512x256xbf16, #tpu.memory_space<vmem>>, vector<512x256xbf16>
    %cst_14 = arith.constant dense<0.000000e+00> : vector<8x256xf32>
    %18 = tpu.matmul %16, %17, %cst_14 {dimension_numbers = #tpu.dot_dimension_numbers<[1], [0], [0], [1], [0, 0, 1, 1], [], []>} : vector<8x512xbf16>, vector<512x256xbf16>, vector<8x256xf32> -> vector<8x256xf32>
    %c0_15 = arith.constant 0 : index
    %c0_16 = arith.constant 0 : index
    %19 = vector.load %arg7[%c0_15, %c0_16] : memref<1x256xf32, #tpu.memory_space<vmem>>, vector<1x256xf32>
    %20 = vector.broadcast %19 : vector<1x256xf32> to vector<8x256xf32>
    %21 = arith.addf %18, %20 : vector<8x256xf32>
    %cst_17 = arith.constant 0.000000e+00 : f32
    %22 = vector.broadcast %cst_17 : f32 to vector<8x256xf32>
    %23 = arith.maximumf %21, %22 : vector<8x256xf32>
    %24 = arith.truncf %23 : vector<8x256xf32> to vector<8x256xbf16>
    %c0_18 = arith.constant 0 : index
    %c0_19 = arith.constant 0 : index
    %25 = vector.load %arg8[%c0_18, %c0_19] : memref<256x512xbf16, #tpu.memory_space<vmem>>, vector<256x512xbf16>
    %cst_20 = arith.constant dense<0.000000e+00> : vector<8x512xf32>
    %26 = tpu.matmul %24, %25, %cst_20 {dimension_numbers = #tpu.dot_dimension_numbers<[1], [0], [0], [1], [0, 0, 1, 1], [], []>} : vector<8x256xbf16>, vector<256x512xbf16>, vector<8x512xf32> -> vector<8x512xf32>
    %c0_21 = arith.constant 0 : index
    %c0_22 = arith.constant 0 : index
    %27 = vector.load %arg9[%c0_21, %c0_22] : memref<1x512xf32, #tpu.memory_space<vmem>>, vector<1x512xf32>
    %28 = vector.broadcast %27 : vector<1x512xf32> to vector<8x512xf32>
    %29 = arith.addf %26, %28 : vector<8x512xf32>
    %30 = vector.extract_strided_slice %29 {offsets = [0, 0], sizes = [8, 256], strides = [1, 1]} : vector<8x512xf32> to vector<8x256xf32>
    %cst_23 = arith.constant 0.000000e+00 : f32
    %31 = vector.broadcast %cst_23 : f32 to vector<8x256xf32>
    %32 = arith.maximumf %30, %31 : vector<8x256xf32>
    %33 = vector.extract_strided_slice %29 {offsets = [0, 256], sizes = [8, 256], strides = [1, 1]} : vector<8x512xf32> to vector<8x256xf32>
    %34 = math.tanh %33 : vector<8x256xf32>
    %35 = tpu.concatenate %32, %34 in 1 : vector<8x256xf32>, vector<8x256xf32> -> vector<8x512xf32>
    %36 = arith.truncf %35 : vector<8x512xf32> to vector<8x512xbf16>
    %c0_24 = arith.constant 0 : index
    %c0_25 = arith.constant 0 : index
    %37 = vector.load %arg10[%c0_24, %c0_25] : memref<512x128xbf16, #tpu.memory_space<vmem>>, vector<512x128xbf16>
    %cst_26 = arith.constant dense<0.000000e+00> : vector<8x128xf32>
    %38 = tpu.matmul %36, %37, %cst_26 {dimension_numbers = #tpu.dot_dimension_numbers<[1], [0], [0], [1], [0, 0, 1, 1], [], []>} : vector<8x512xbf16>, vector<512x128xbf16>, vector<8x128xf32> -> vector<8x128xf32>
    %c0_27 = arith.constant 0 : index
    %c0_28 = arith.constant 0 : index
    %39 = vector.load %arg11[%c0_27, %c0_28] : memref<1x128xf32, #tpu.memory_space<vmem>>, vector<1x128xf32>
    %40 = vector.broadcast %39 : vector<1x128xf32> to vector<8x128xf32>
    %41 = arith.addf %38, %40 : vector<8x128xf32>
    %42 = tpu.iota {dimensions = array<i32: 1>} : vector<8x128xi32>
    %c4_i32 = arith.constant 4 : i32
    %43 = vector.broadcast %c4_i32 : i32 to vector<8x128xi32>
    %44 = arith.cmpi slt, %42, %43 : vector<8x128xi32>
    %c4_i32_29 = arith.constant 4 : i32
    %45 = vector.broadcast %c4_i32_29 : i32 to vector<8x128xi32>
    %46 = arith.cmpi sge, %42, %45 : vector<8x128xi32>
    %c12_i32 = arith.constant 12 : i32
    %47 = vector.broadcast %c12_i32 : i32 to vector<8x128xi32>
    %48 = arith.cmpi slt, %42, %47 : vector<8x128xi32>
    %49 = arith.andi %46, %48 : vector<8x128xi1>
    %cst_30 = arith.constant -1.000000e+30 : f32
    %50 = vector.broadcast %cst_30 : f32 to vector<8x128xf32>
    %51 = arith.select %44, %41, %50 : vector<8x128xi1>, vector<8x128xf32>
    %cst_31 = arith.constant dense<0xFF800000> : vector<8xf32>
    %52 = vector.multi_reduction <maximumf>, %51, %cst_31 [1] : vector<8x128xf32> to vector<8xf32>
    %53 = vector.shape_cast %52 : vector<8xf32> to vector<8x1xf32>
    %54 = vector.broadcast %53 : vector<8x1xf32> to vector<8x128xf32>
    %55 = arith.subf %51, %54 : vector<8x128xf32>
    %56 = math.exp %55 : vector<8x128xf32>
    %cst_32 = arith.constant 0.000000e+00 : f32
    %57 = vector.broadcast %cst_32 : f32 to vector<8x128xf32>
    %58 = arith.select %44, %56, %57 : vector<8x128xi1>, vector<8x128xf32>
    %cst_33 = arith.constant dense<0.000000e+00> : vector<8xf32>
    %59 = vector.multi_reduction <add>, %58, %cst_33 [1] : vector<8x128xf32> to vector<8xf32>
    %60 = vector.shape_cast %59 : vector<8xf32> to vector<8x1xf32>
    %61 = tpu.reciprocal %60 {approx = true} : vector<8x1xf32> -> vector<8x1xf32>
    %62 = arith.mulf %60, %61 : vector<8x1xf32>
    %cst_34 = arith.constant 2.000000e+00 : f32
    %63 = vector.broadcast %cst_34 : f32 to vector<8x1xf32>
    %64 = arith.subf %63, %62 : vector<8x1xf32>
    %65 = arith.mulf %61, %64 : vector<8x1xf32>
    %66 = vector.broadcast %65 : vector<8x1xf32> to vector<8x128xf32>
    %67 = arith.mulf %58, %66 : vector<8x128xf32>
    %68 = math.tanh %41 : vector<8x128xf32>
    %cst_35 = arith.constant 1.000000e+00 : f32
    %69 = vector.broadcast %cst_35 : f32 to vector<8x128xf32>
    %70 = arith.addf %68, %69 : vector<8x128xf32>
    %cst_36 = arith.constant 5.000000e-01 : f32
    %71 = vector.broadcast %cst_36 : f32 to vector<8x128xf32>
    %72 = arith.mulf %71, %70 : vector<8x128xf32>
    %cst_37 = arith.constant 0.000000e+00 : f32
    %73 = vector.broadcast %cst_37 : f32 to vector<8x128xf32>
    %74 = arith.select %49, %72, %73 : vector<8x128xi1>, vector<8x128xf32>
    %75 = arith.addf %67, %74 : vector<8x128xf32>
    %c0_38 = arith.constant 0 : index
    %c0_39 = arith.constant 0 : index
    %76 = vector.load %arg12[%c0_38, %c0_39] : memref<8x128xf32, #tpu.memory_space<vmem>>, vector<8x128xf32>
    tpu.vector_store %arg12[%c0_38, %c0_39], %75 {strides = array<i32>} : memref<8x128xf32, #tpu.memory_space<vmem>>, vector<8x128xf32>,
    return
  }
  func.func @transform_0(%arg0: i32) -> (i32, i32) {
    %c0_i32 = arith.constant 0 : i32
    %c0_i32_0 = arith.constant 0 : i32
    return %arg0, %c0_i32 : i32, i32
  }
  func.func @transform_1(%arg0: i32) -> (i32, i32) {
    %c0_i32 = arith.constant 0 : i32
    %c0_i32_0 = arith.constant 0 : i32
    %c0_i32_1 = arith.constant 0 : i32
    return %c0_i32, %c0_i32_0 : i32, i32
  }
  func.func @transform_2(%arg0: i32) -> (i32, i32) {
    %c0_i32 = arith.constant 0 : i32
    %c0_i32_0 = arith.constant 0 : i32
    %c0_i32_1 = arith.constant 0 : i32
    return %c0_i32, %c0_i32_0 : i32, i32
  }
  func.func @transform_3(%arg0: i32) -> (i32, i32) {
    %c0_i32 = arith.constant 0 : i32
    %c0_i32_0 = arith.constant 0 : i32
    %c0_i32_1 = arith.constant 0 : i32
    return %c0_i32, %c0_i32_0 : i32, i32
  }
  func.func @transform_4(%arg0: i32) -> (i32, i32) {
    %c0_i32 = arith.constant 0 : i32
    %c0_i32_0 = arith.constant 0 : i32
    %c0_i32_1 = arith.constant 0 : i32
    return %c0_i32, %c0_i32_0 : i32, i32
  }
  func.func @transform_5(%arg0: i32) -> (i32, i32) {
    %c0_i32 = arith.constant 0 : i32
    %c0_i32_0 = arith.constant 0 : i32
    %c0_i32_1 = arith.constant 0 : i32
    return %c0_i32, %c0_i32_0 : i32, i32
  }
  func.func @transform_6(%arg0: i32) -> (i32, i32) {
    %c0_i32 = arith.constant 0 : i32
    %c0_i32_0 = arith.constant 0 : i32
    %c0_i32_1 = arith.constant 0 : i32
    return %c0_i32, %c0_i32_0 : i32, i32
  }
  func.func @transform_7(%arg0: i32) -> (i32, i32) {
    %c0_i32 = arith.constant 0 : i32
    %c0_i32_0 = arith.constant 0 : i32
    %c0_i32_1 = arith.constant 0 : i32
    return %c0_i32, %c0_i32_0 : i32, i32
  }
  func.func @transform_8(%arg0: i32) -> (i32, i32) {
    %c0_i32 = arith.constant 0 : i32
    %c0_i32_0 = arith.constant 0 : i32
    %c0_i32_1 = arith.constant 0 : i32
    return %c0_i32, %c0_i32_0 : i32, i32
  }
  func.func @transform_9(%arg0: i32) -> (i32, i32) {
    %c0_i32 = arith.constant 0 : i32
    %c0_i32_0 = arith.constant 0 : i32
    %c0_i32_1 = arith.constant 0 : i32
    return %c0_i32, %c0_i32_0 : i32, i32
  }
  func.func @transform_10(%arg0: i32) -> (i32, i32) {
    %c0_i32 = arith.constant 0 : i32
    %c0_i32_0 = arith.constant 0 : i32
    %c0_i32_1 = arith.constant 0 : i32
    return %c0_i32, %c0_i32_0 : i32, i32
  }
  func.func @transform_11(%arg0: i32) -> (i32, i32) {
    %c0_i32 = arith.constant 0 : i32
    %c0_i32_0 = arith.constant 0 : i32
    return %arg0, %c0_i32 : i32, i32
  }
}

</mosaic_0001>

<llo_original>
// kernel: tpu_custom_call.1
$region0: #{tpu_custom_call.1}
  #allocation0 [shape = 'u32[]', space=smem, size = 0x4, offset = 0x4, fixed_abs, tag = 'smem constant byte address 0x4 - core index']
  #allocation1 [shape = 'u32[144,128]{1,0:T(1,128)}', space=vmem, size = 0x12000, scoped, tag = 'internal scratch']
  %s0 = inlined_call_operand.hbm [shape: bf16[8,32], index: 0, kind: input, shape index: {}]
  %s1 = inlined_call_operand.hbm [shape: bf16[32,512], index: 1, kind: input, shape index: {}]
  %s2 = inlined_call_operand.hbm [shape: f32[1,512], index: 2, kind: input, shape index: {}]
  %s3 = inlined_call_operand.hbm [shape: bf16[512,512], index: 3, kind: input, shape index: {}]
  %s4 = inlined_call_operand.vmem [shape: f32[1,512], index: 4, kind: input, shape index: {}]
  %s5 = inlined_call_operand.hbm [shape: bf16[512,256], index: 5, kind: input, shape index: {}]
  %s6 = inlined_call_operand.vmem [shape: f32[1,256], index: 6, kind: input, shape index: {}]
  %s7 = inlined_call_operand.hbm [shape: bf16[256,512], index: 7, kind: input, shape index: {}]
  %s8 = inlined_call_operand.vmem [shape: f32[1,512], index: 8, kind: input, shape index: {}]
  %s9 = inlined_call_operand.hbm [shape: bf16[512,128], index: 9, kind: input, shape index: {}]
  %s10 = inlined_call_operand.vmem [shape: f32[1,128], index: 10, kind: input, shape index: {}]
  %s11 = inlined_call_operand.hbm [shape: f32[8,128], index: 11, kind: output, shape index: {}]
  %s12 = sld [smem:[#allocation0]]
  $region82: #{tpu_custom_call.1} parent=0
    _
  %s14 = ssub.s32 1, %s12
  %s15 = scalar_select 0, %s14, %s12
  $region1: #{tpu_custom_call.1} parent=0
    #allocation2 [shape = 'u8[2048]{0}', space=vmem, size = 0x800, scoped, tag = 'input window, operand 0, single buffered']
    #allocation3 [shape = 's32[1]{0}', space=sflag, size = 0x4, scoped, tag = 'scoped memory for tpu_custom_call.1']
    #allocation4 [shape = 's32[1]{0}', space=sflag, size = 0x4, scoped, tag = 'scoped memory for tpu_custom_call.1']
    #allocation5 [shape = 'u8[32768]{0}', space=vmem, size = 0x8000, scoped, tag = 'input window, operand 1, single buffered']
    #allocation6 [shape = 's32[1]{0}', space=sflag, size = 0x4, scoped, tag = 'scoped memory for tpu_custom_call.1']
    #allocation7 [shape = 'u8[2048]{0}', space=vmem, size = 0x800, scoped, tag = 'input window, operand 2, single buffered']
    #allocation8 [shape = 'u8[524288]{0}', space=vmem, size = 0x80000, scoped, tag = 'input window, operand 3, single buffered']
    #allocation9 [shape = 's32[1]{0}', space=sflag, size = 0x4, scoped, tag = 'scoped memory for tpu_custom_call.1']
    #allocation10 [shape = 'u8[262144]{0}', space=vmem, size = 0x40000, scoped, tag = 'input window, operand 5, single buffered']
    #allocation11 [shape = 'u8[262144]{0}', space=vmem, size = 0x40000, scoped, tag = 'input window, operand 7, single buffered']
    #allocation12 [shape = 's32[1]{0}', space=sflag, size = 0x4, scoped, tag = 'scoped memory for tpu_custom_call.1']
    #allocation13 [shape = 'u8[131072]{0}', space=vmem, size = 0x20000, scoped, tag = 'input window, operand 9, single buffered']
    #allocation14 [shape = 'u8[4096]{0}', space=vmem, size = 0x1000, scoped, tag = 'output window, operand 0, single buffered']
    %16 = vsyncpa [#allocation3], 0
    %17 = vsyncpa [#allocation6], 0
    %18 = vsyncpa [#allocation9], 0
    %19 = vsyncpa [#allocation12], 0
    %20 = vsyncpa [#allocation4], 0
    // Predicated region
    $region2: #{tpu_custom_call.1} parent=1 // pred_check
      _
    $region3: #{tpu_custom_call.1} parent=1 // pred_check_branch
      %22 = sbr.rel (0) target = $region5
    $region4: #{tpu_custom_call.1} parent=1 // pred_region
      %s24 = ssub.s32 64, 64
      %25 = vsyncadd [#allocation3], %s24
      %s27 = sshll.u32 [#allocation2], 4
      %s28 = int_to_ptr.vmem [resolvable:$true] %s27
      %30 = dma.hbm_to_vmem [thread:$0]  %s0, 64, %s28, [#allocation3]
    $region5: #{tpu_custom_call.1} parent=1 // pred_fallthru
      _
    // Predicated region
    $region6: #{tpu_custom_call.1} parent=1 // pred_check
      _
    $region7: #{tpu_custom_call.1} parent=1 // pred_check_branch
      %32 = sbr.rel (0) target = $region9
    $region8: #{tpu_custom_call.1} parent=1 // pred_region
      %s34 = ssub.s32 1024, 1024
      %35 = vsyncadd [#allocation6], %s34
      %s36 = sshll.u32 [#allocation5], 4
      %s37 = int_to_ptr.vmem [resolvable:$true] %s36
      %42 = dma.hbm_to_vmem [thread:$0]  %s1, 1024, %s37, [#allocation6], 256, 256, 16
    $region9: #{tpu_custom_call.1} parent=1 // pred_fallthru
      _
    // Predicated region
    $region10: #{tpu_custom_call.1} parent=1 // pred_check
      _
    $region11: #{tpu_custom_call.1} parent=1 // pred_check_branch
      %44 = sbr.rel (0) target = $region13
    $region12: #{tpu_custom_call.1} parent=1 // pred_region
      %s46 = ssub.s32 64, 64
      %47 = vsyncadd [#allocation6], %s46
      %s49 = sshll.u32 [#allocation7], 4
      %s50 = int_to_ptr.vmem [resolvable:$true] %s49
      %52 = dma.hbm_to_vmem [thread:$0]  %s2, 64, %s50, [#allocation6]
    $region13: #{tpu_custom_call.1} parent=1 // pred_fallthru
      _
    // Predicated region
    $region14: #{tpu_custom_call.1} parent=1 // pred_check
      _
    $region15: #{tpu_custom_call.1} parent=1 // pred_check_branch
      %54 = sbr.rel (0) target = $region17
    $region16: #{tpu_custom_call.1} parent=1 // pred_region
      %s56 = ssub.s32 16384, 16384
      %57 = vsyncadd [#allocation9], %s56
      %s58 = sshll.u32 [#allocation8], 4
      %s59 = int_to_ptr.vmem [resolvable:$true] %s58
      %64 = dma.hbm_to_vmem [thread:$0]  %s3, 16384, %s59, [#allocation9], 256, 256, 16
    $region17: #{tpu_custom_call.1} parent=1 // pred_fallthru
      _
    // Predicated region
    $region18: #{tpu_custom_call.1} parent=1 // pred_check
      _
    $region19: #{tpu_custom_call.1} parent=1 // pred_check_branch
      %66 = sbr.rel (0) target = $region21
    $region20: #{tpu_custom_call.1} parent=1 // pred_region
      _
    $region21: #{tpu_custom_call.1} parent=1 // pred_fallthru
      _
    // Predicated region
    $region22: #{tpu_custom_call.1} parent=1 // pred_check
      _
    $region23: #{tpu_custom_call.1} parent=1 // pred_check_branch
      %68 = sbr.rel (0) target = $region25
    $region24: #{tpu_custom_call.1} parent=1 // pred_region
      %s70 = ssub.s32 8192, 8192
      %71 = vsyncadd [#allocation9], %s70
      %s72 = sshll.u32 [#allocation10], 4
      %s73 = int_to_ptr.vmem [resolvable:$true] %s72
      %78 = dma.hbm_to_vmem [thread:$0]  %s5, 8192, %s73, [#allocation9], 128, 128, 8
    $region25: #{tpu_custom_call.1} parent=1 // pred_fallthru
      _
    // Predicated region
    $region26: #{tpu_custom_call.1} parent=1 // pred_check
      _
    $region27: #{tpu_custom_call.1} parent=1 // pred_check_branch
      %80 = sbr.rel (0) target = $region29
    $region28: #{tpu_custom_call.1} parent=1 // pred_region
      _
    $region29: #{tpu_custom_call.1} parent=1 // pred_fallthru
      _
    // Predicated region
    $region30: #{tpu_custom_call.1} parent=1 // pred_check
      _
    $region31: #{tpu_custom_call.1} parent=1 // pred_check_branch
      %82 = sbr.rel (0) target = $region33
    $region32: #{tpu_custom_call.1} parent=1 // pred_region
      %s84 = ssub.s32 8192, 8192
      %85 = vsyncadd [#allocation12], %s84
      %s86 = sshll.u32 [#allocation11], 4
      %s87 = int_to_ptr.vmem [resolvable:$true] %s86
      %92 = dma.hbm_to_vmem [thread:$0]  %s7, 8192, %s87, [#allocation12], 256, 256, 16
    $region33: #{tpu_custom_call.1} parent=1 // pred_fallthru
      _
    // Predicated region
    $region34: #{tpu_custom_call.1} parent=1 // pred_check
      _
    $region35: #{tpu_custom_call.1} parent=1 // pred_check_branch
      %94 = sbr.rel (0) target = $region37
    $region36: #{tpu_custom_call.1} parent=1 // pred_region
      _
    $region37: #{tpu_custom_call.1} parent=1 // pred_fallthru
      _
    // Predicated region
    $region38: #{tpu_custom_call.1} parent=1 // pred_check
      _
    $region39: #{tpu_custom_call.1} parent=1 // pred_check_branch
      %96 = sbr.rel (0) target = $region41
    $region40: #{tpu_custom_call.1} parent=1 // pred_region
      %s98 = ssub.s32 4096, 4096
      %99 = vsyncadd [#allocation12], %s98
      %s100 = sshll.u32 [#allocation13], 4
      %s101 = int_to_ptr.vmem [resolvable:$true] %s100
      %106 = dma.hbm_to_vmem [thread:$0]  %s9, 4096, %s101, [#allocation12], 64, 64, 4
    $region41: #{tpu_custom_call.1} parent=1 // pred_fallthru
      _
    // Predicated region
    $region42: #{tpu_custom_call.1} parent=1 // pred_check
      _
    $region43: #{tpu_custom_call.1} parent=1 // pred_check_branch
      %108 = sbr.rel (0) target = $region45
    $region44: #{tpu_custom_call.1} parent=1 // pred_region
      _
    $region45: #{tpu_custom_call.1} parent=1 // pred_fallthru
      _
    // Predicated region
    $region46: #{tpu_custom_call.1} parent=1 // pred_check
      _
    $region47: #{tpu_custom_call.1} parent=1 // pred_check_branch
      %110 = sbr.rel (0) target = $region49
    $region48: #{tpu_custom_call.1} parent=1 // pred_region
      %111 = dma.done [#allocation3], 64
    $region49: #{tpu_custom_call.1} parent=1 // pred_fallthru
      _
    // Predicated region
    $region50: #{tpu_custom_call.1} parent=1 // pred_check
      _
    $region51: #{tpu_custom_call.1} parent=1 // pred_check_branch
      %113 = sbr.rel (0) target = $region53
    $region52: #{tpu_custom_call.1} parent=1 // pred_region
      %114 = dma.done [#allocation6], 1024
    $region53: #{tpu_custom_call.1} parent=1 // pred_fallthru
      _
    // Predicated region
    $region54: #{tpu_custom_call.1} parent=1 // pred_check
      _
    $region55: #{tpu_custom_call.1} parent=1 // pred_check_branch
      %116 = sbr.rel (0) target = $region57
    $region56: #{tpu_custom_call.1} parent=1 // pred_region
      %117 = dma.done [#allocation6], 64
    $region57: #{tpu_custom_call.1} parent=1 // pred_fallthru
      _
    // Predicated region
    $region58: #{tpu_custom_call.1} parent=1 // pred_check
      _
    $region59: #{tpu_custom_call.1} parent=1 // pred_check_branch
      %119 = sbr.rel (0) target = $region61
    $region60: #{tpu_custom_call.1} parent=1 // pred_region
      %120 = dma.done [#allocation9], 16384
    $region61: #{tpu_custom_call.1} parent=1 // pred_fallthru
      _
    // Predicated region
    $region62: #{tpu_custom_call.1} parent=1 // pred_check
      _
    $region63: #{tpu_custom_call.1} parent=1 // pred_check_branch
      %122 = sbr.rel (0) target = $region65
    $region64: #{tpu_custom_call.1} parent=1 // pred_region
      %123 = dma.done [#allocation9], 8192
    $region65: #{tpu_custom_call.1} parent=1 // pred_fallthru
      _
    // Predicated region
    $region66: #{tpu_custom_call.1} parent=1 // pred_check
      _
    $region67: #{tpu_custom_call.1} parent=1 // pred_check_branch
      %125 = sbr.rel (0) target = $region69
    $region68: #{tpu_custom_call.1} parent=1 // pred_region
      %126 = dma.done [#allocation12], 8192
    $region69: #{tpu_custom_call.1} parent=1 // pred_fallthru
      _
    // Predicated region
    $region70: #{tpu_custom_call.1} parent=1 // pred_check
      _
    $region71: #{tpu_custom_call.1} parent=1 // pred_check_branch
      %128 = sbr.rel (0) target = $region73
    $region72: #{tpu_custom_call.1} parent=1 // pred_region
      %129 = dma.done [#allocation12], 4096
    $region73: #{tpu_custom_call.1} parent=1 // pred_fallthru
      _
    %v131 = vld [vmem:[#allocation2] sm:$0xf]
    %v132 = vld [vmem:[#allocation5] sm:$0xff]
    %v133 = vld [vmem:[#allocation5 + $0x8] sm:$0xff]
    %v134 = vld [vmem:[#allocation5 + $0x10] sm:$0xff]
    %v135 = vld [vmem:[#allocation5 + $0x18] sm:$0xff]
    %v136 = vld [vmem:[#allocation5 + $0x20] sm:$0xff]
    %v137 = vld [vmem:[#allocation5 + $0x28] sm:$0xff]
    %v138 = vld [vmem:[#allocation5 + $0x30] sm:$0xff]
    %v139 = vld [vmem:[#allocation5 + $0x38] sm:$0xff]
    %v140 = vld [vmem:[#allocation7] sm:$0xf]
    %v142 = vlaneseq
    %v143 = vshrl.u32 %v142, 7
    %v144 = vsub.s32 0, %v143
    %v145 = vrot.slane %v140, %v144
    %v146 = vlaneseq
    %v147 = vshrl.u32 %v146, 7
    %v148 = vsub.s32 1, %v147
    %v149 = vrot.slane %v140, %v148
    %v150 = vlaneseq
    %v151 = vshrl.u32 %v150, 7
    %v152 = vsub.s32 2, %v151
    %v153 = vrot.slane %v140, %v152
    %v154 = vlaneseq
    %v155 = vshrl.u32 %v154, 7
    %v156 = vsub.s32 3, %v155
    %v157 = vrot.slane %v140, %v156
    %v170 = vunpack.c.l.b16 %v132
    %v171 = vunpack.c.h.b16 %v132
    %v172 = vunpack.c.l.b16 %v133
    %v173 = vunpack.c.h.b16 %v133
    %v174 = vunpack.c.l.b16 %v134
    %v175 = vunpack.c.h.b16 %v134
    %v176 = vunpack.c.l.b16 %v135
    %v177 = vunpack.c.h.b16 %v135
    %v178 = vunpack.c.l.b16 %v136
    %v179 = vunpack.c.h.b16 %v136
    %v180 = vunpack.c.l.b16 %v137
    %v181 = vunpack.c.h.b16 %v137
    %v182 = vunpack.c.l.b16 %v138
    %v183 = vunpack.c.h.b16 %v138
    %v184 = vunpack.c.l.b16 %v139
    %v185 = vunpack.c.h.b16 %v139
    %v186 = vpack.c.b16 %v174, %v170
    %v187 = vpack.c.b16 %v175, %v171
    %v188 = vpack.c.b16 %v176, %v172
    %v189 = vpack.c.b16 %v177, %v173
    %v190 = vpack.c.b16 %v182, %v178
    %v191 = vpack.c.b16 %v183, %v179
    %v192 = vpack.c.b16 %v184, %v180
    %v193 = vpack.c.b16 %v185, %v181
    %vm202 = vcmask 261120
    %v204 = vsel %vm202, %v131, 0
    %206 = vmatprep.subr.bf16.mxu0 0
    %207 = vmatpush1.bf16.msra.mxu0 0
    %208 = vmatprep.subr.bf16.mxu0 0
    %209 = vmatpush1.bf16.msra.mxu0 0
    %210 = vmatprep.subr.bf16.mxu0 0
    %211 = vmatpush1.bf16.msra.mxu0 0
    %212 = vmatprep.subr.bf16.mxu0 0
    %213 = vmatpush1.bf16.msra.mxu0 0
    %214 = vmatprep.subr.bf16.mxu0 0
    %215 = vmatpush1.bf16.msra.mxu0 0
    %216 = vmatprep.subr.bf16.mxu0 0
    %217 = vmatpush1.bf16.msra.mxu0 0
    %218 = vmatprep.subr.bf16.mxu0 %v191
    %219 = vmatpush1.bf16.msra.mxu0 %v190
    %220 = vmatprep.subr.bf16.mxu0 %v187
    %221 = vmatpush1.bf16.msra.mxu0 %v186
    %222 = vmatprep.subr.bf16.mxu0 0
    %223 = vmatpush2.bf16.msra.mxu0 0
    %224 = vmatprep.subr.bf16.mxu0 0
    %225 = vmatpush2.bf16.msra.mxu0 0
    %226 = vmatprep.subr.bf16.mxu0 0
    %227 = vmatpush2.bf16.msra.mxu0 0
    %228 = vmatprep.subr.bf16.mxu0 0
    %229 = vmatpush2.bf16.msra.mxu0 0
    %230 = vmatprep.subr.bf16.mxu0 0
    %231 = vmatpush2.bf16.msra.mxu0 0
    %232 = vmatprep.subr.bf16.mxu0 0
    %233 = vmatpush2.bf16.msra.mxu0 0
    %234 = vmatprep.subr.bf16.mxu0 0
    %235 = vmatpush2.bf16.msra.mxu0 0
    %236 = vmatprep.subr.bf16.mxu0 0
    %237 = vmatpush2.bf16.msra.mxu0 0
    %238 = vmatprep.mubr.bf16.mxu0 0
    %239 = vmatmul.mubr.bf16.gmra.mxu0 %v204
    %v240 = vpop.f32.mrf.mxu0
    %v241 = vadd.f32 %v145, %v240
    %v242 = vpop.f32.mrf.mxu0
    %v243 = vadd.f32 %v149, %v242
    %v244 = vpop.f32.mrf.mxu0
    %v245 = vpop.f32.mrf.mxu0
    %246 = vdwg.mxu0
    %247 = vmatprep.subr.bf16.mxu0 0
    %248 = vmatpush1.bf16.msra.mxu0 0
    %249 = vmatprep.subr.bf16.mxu0 0
    %250 = vmatpush1.bf16.msra.mxu0 0
    %251 = vmatprep.subr.bf16.mxu0 0
    %252 = vmatpush1.bf16.msra.mxu0 0
    %253 = vmatprep.subr.bf16.mxu0 0
    %254 = vmatpush1.bf16.msra.mxu0 0
    %255 = vmatprep.subr.bf16.mxu0 0
    %256 = vmatpush1.bf16.msra.mxu0 0
    %257 = vmatprep.subr.bf16.mxu0 0
    %258 = vmatpush1.bf16.msra.mxu0 0
    %259 = vmatprep.subr.bf16.mxu0 %v193
    %260 = vmatpush1.bf16.msra.mxu0 %v192
    %261 = vmatprep.subr.bf16.mxu0 %v189
    %262 = vmatpush1.bf16.msra.mxu0 %v188
    %263 = vmatprep.subr.bf16.mxu0 0
    %264 = vmatpush2.bf16.msra.mxu0 0
    %265 = vmatprep.subr.bf16.mxu0 0
    %266 = vmatpush2.bf16.msra.mxu0 0
    %267 = vmatprep.subr.bf16.mxu0 0
    %268 = vmatpush2.bf16.msra.mxu0 0
    %269 = vmatprep.subr.bf16.mxu0 0
    %270 = vmatpush2.bf16.msra.mxu0 0
    %271 = vmatprep.subr.bf16.mxu0 0
    %272 = vmatpush2.bf16.msra.mxu0 0
    %273 = vmatprep.subr.bf16.mxu0 0
    %274 = vmatpush2.bf16.msra.mxu0 0
    %275 = vmatprep.subr.bf16.mxu0 0
    %276 = vmatpush2.bf16.msra.mxu0 0
    %277 = vmatprep.subr.bf16.mxu0 0
    %278 = vmatpush2.bf16.msra.mxu0 0
    %279 = vmatprep.mubr.bf16.mxu0 0
    %280 = vmatmul.mubr.bf16.gmra.mxu0 %v204
    %v281 = vpop.f32.mrf.mxu0
    %v282 = vadd.f32 %v153, %v281
    %v283 = vpop.f32.mrf.mxu0
    %v284 = vadd.f32 %v157, %v283
    %v285 = vpop.f32.mrf.mxu0
    %v286 = vpop.f32.mrf.mxu0
    %287 = vdwg.mxu0
    %v288 = vmax.f32 %v241, 0.0
    %v289 = vmax.f32 %v243, 0.0
    %v290 = vmax.f32 %v282, 0.0
    %v291 = vmax.f32 %v284, 0.0
    %v292 = vpack.c.bf16 %v288, %v288
    %v293 = vpack.c.bf16 %v289, %v289
    %v294 = vpack.c.bf16 %v290, %v290
    %v295 = vpack.c.bf16 %v291, %v291
    %v296 = vld [vmem:[#allocation8] sm:$0xff]
    %v297 = vld [vmem:[#allocation8 + $0x8] sm:$0xff]
    %v298 = vld [vmem:[#allocation8 + $0x10] sm:$0xff]
    %v299 = vld [vmem:[#allocation8 + $0x18] sm:$0xff]
    %v300 = vld [vmem:[#allocation8 + $0x20] sm:$0xff]
    %v301 = vld [vmem:[#allocation8 + $0x28] sm:$0xff]
    %v302 = vld [vmem:[#allocation8 + $0x30] sm:$0xff]
    %v303 = vld [vmem:[#allocation8 + $0x38] sm:$0xff]
    %v304 = vld [vmem:[#allocation8 + $0x40] sm:$0xff]
    %v305 = vld [vmem:[#allocation8 + $0x48] sm:$0xff]
    %v306 = vld [vmem:[#allocation8 + $0x50] sm:$0xff]
    %v307 = vld [vmem:[#allocation8 + $0x58] sm:$0xff]
    %v308 = vld [vmem:[#allocation8 + $0x60] sm:$0xff]
    %v309 = vld [vmem:[#allocation8 + $0x68] sm:$0xff]
    %v310 = vld [vmem:[#allocation8 + $0x70] sm:$0xff]
    %v311 = vld [vmem:[#allocation8 + $0x78] sm:$0xff]
    %v312 = vld [vmem:[#allocation8 + $0x80] sm:$0xff]
    %v313 = vld [vmem:[#allocation8 + $0x88] sm:$0xff]
    %v314 = vld [vmem:[#allocation8 + $0x90] sm:$0xff]
    %v315 = vld [vmem:[#allocation8 + $0x98] sm:$0xff]
    %v316 = vld [vmem:[#allocation8 + $0xa0] sm:$0xff]
    %v317 = vld [vmem:[#allocation8 + $0xa8] sm:$0xff]
    %v318 = vld [vmem:[#allocation8 + $0xb0] sm:$0xff]
    %v319 = vld [vmem:[#allocation8 + $0xb8] sm:$0xff]
    %v320 = vld [vmem:[#allocation8 + $0xc0] sm:$0xff]
    %v321 = vld [vmem:[#allocation8 + $0xc8] sm:$0xff]
    %v322 = vld [vmem:[#allocation8 + $0xd0] sm:$0xff]
    %v323 = vld [vmem:[#allocation8 + $0xd8] sm:$0xff]
    %v324 = vld [vmem:[#allocation8 + $0xe0] sm:$0xff]
    %v325 = vld [vmem:[#allocation8 + $0xe8] sm:$0xff]
    %v326 = vld [vmem:[#allocation8 + $0xf0] sm:$0xff]
    %v327 = vld [vmem:[#allocation8 + $0xf8] sm:$0xff]
    %v328 = vld [vmem:[#allocation8 + $0x100] sm:$0xff]
    %v329 = vld [vmem:[#allocation8 + $0x108] sm:$0xff]
    %v330 = vld [vmem:[#allocation8 + $0x110] sm:$0xff]
    %v331 = vld [vmem:[#allocation8 + $0x118] sm:$0xff]
    %v332 = vld [vmem:[#allocation8 + $0x120] sm:$0xff]
    %v333 = vld [vmem:[#allocation8 + $0x128] sm:$0xff]
    %v334 = vld [vmem:[#allocation8 + $0x130] sm:$0xff]
    %v335 = vld [vmem:[#allocation8 + $0x138] sm:$0xff]
    %v336 = vld [vmem:[#allocation8 + $0x140] sm:$0xff]
    %v337 = vld [vmem:[#allocation8 + $0x148] sm:$0xff]
    %v338 = vld [vmem:[#allocation8 + $0x150] sm:$0xff]
    %v339 = vld [vmem:[#allocation8 + $0x158] sm:$0xff]
    %v340 = vld [vmem:[#allocation8 + $0x160] sm:$0xff]
    %v341 = vld [vmem:[#allocation8 + $0x168] sm:$0xff]
    %v342 = vld [vmem:[#allocation8 + $0x170] sm:$0xff]
    %v343 = vld [vmem:[#allocation8 + $0x178] sm:$0xff]
    %v344 = vld [vmem:[#allocation8 + $0x180] sm:$0xff]
    %v345 = vld [vmem:[#allocation8 + $0x188] sm:$0xff]
    %v346 = vld [vmem:[#allocation8 + $0x190] sm:$0xff]
    %v347 = vld [vmem:[#allocation8 + $0x198] sm:$0xff]
    %v348 = vld [vmem:[#allocation8 + $0x1a0] sm:$0xff]
    %v349 = vld [vmem:[#allocation8 + $0x1a8] sm:$0xff]
    %v350 = vld [vmem:[#allocation8 + $0x1b0] sm:$0xff]
    %v351 = vld [vmem:[#allocation8 + $0x1b8] sm:$0xff]
    %v352 = vld [vmem:[#allocation8 + $0x1c0] sm:$0xff]
    %v353 = vld [vmem:[#allocation8 + $0x1c8] sm:$0xff]
    %v354 = vld [vmem:[#allocation8 + $0x1d0] sm:$0xff]
    %v355 = vld [vmem:[#allocation8 + $0x1d8] sm:$0xff]
    %v356 = vld [vmem:[#allocation8 + $0x1e0] sm:$0xff]
    %v357 = vld [vmem:[#allocation8 + $0x1e8] sm:$0xff]
    %v358 = vld [vmem:[#allocation8 + $0x1f0] sm:$0xff]
    %v359 = vld [vmem:[#allocation8 + $0x1f8] sm:$0xff]
    %v360 = vld [vmem:[#allocation8 + $0x200] sm:$0xff]
    %v361 = vld [vmem:[#allocation8 + $0x208] sm:$0xff]
    %v362 = vld [vmem:[#allocation8 + $0x210] sm:$0xff]
    %v363 = vld [vmem:[#allocation8 + $0x218] sm:$0xff]
    %v364 = vld [vmem:[#allocation8 + $0x220] sm:$0xff]
    %v365 = vld [vmem:[#allocation8 + $0x228] sm:$0xff]
    %v366 = vld [vmem:[#allocation8 + $0x230] sm:$0xff]
    %v367 = vld [vmem:[#allocation8 + $0x238] sm:$0xff]
    %v368 = vld [vmem:[#allocation8 + $0x240] sm:$0xff]
    %v369 = vld [vmem:[#allocation8 + $0x248] sm:$0xff]
    %v370 = vld [vmem:[#allocation8 + $0x250] sm:$0xff]
    %v371 = vld [vmem:[#allocation8 + $0x258] sm:$0xff]
    %v372 = vld [vmem:[#allocation8 + $0x260] sm:$0xff]
    %v373 = vld [vmem:[#allocation8 + $0x268] sm:$0xff]
    %v374 = vld [vmem:[#allocation8 + $0x270] sm:$0xff]
    %v375 = vld [vmem:[#allocation8 + $0x278] sm:$0xff]
    %v376 = vld [vmem:[#allocation8 + $0x280] sm:$0xff]
    %v377 = vld [vmem:[#allocation8 + $0x288] sm:$0xff]
    %v378 = vld [vmem:[#allocation8 + $0x290] sm:$0xff]
    %v379 = vld [vmem:[#allocation8 + $0x298] sm:$0xff]
    %v380 = vld [vmem:[#allocation8 + $0x2a0] sm:$0xff]
    %v381 = vld [vmem:[#allocation8 + $0x2a8] sm:$0xff]
    %v382 = vld [vmem:[#allocation8 + $0x2b0] sm:$0xff]
    %v383 = vld [vmem:[#allocation8 + $0x2b8] sm:$0xff]
    %v384 = vld [vmem:[#allocation8 + $0x2c0] sm:$0xff]
    %v385 = vld [vmem:[#allocation8 + $0x2c8] sm:$0xff]
    %v386 = vld [vmem:[#allocation8 + $0x2d0] sm:$0xff]
    %v387 = vld [vmem:[#allocation8 + $0x2d8] sm:$0xff]
    %v388 = vld [vmem:[#allocation8 + $0x2e0] sm:$0xff]
    %v389 = vld [vmem:[#allocation8 + $0x2e8] sm:$0xff]
    %v390 = vld [vmem:[#allocation8 + $0x2f0] sm:$0xff]
    %v391 = vld [vmem:[#allocation8 + $0x2f8] sm:$0xff]
    %v392 = vld [vmem:[#allocation8 + $0x300] sm:$0xff]
    %v393 = vld [vmem:[#allocation8 + $0x308] sm:$0xff]
    %v394 = vld [vmem:[#allocation8 + $0x310] sm:$0xff]
    %v395 = vld [vmem:[#allocation8 + $0x318] sm:$0xff]
    %v396 = vld [vmem:[#allocation8 + $0x320] sm:$0xff]
    %v397 = vld [vmem:[#allocation8 + $0x328] sm:$0xff]
    %v398 = vld [vmem:[#allocation8 + $0x330] sm:$0xff]
    %v399 = vld [vmem:[#allocation8 + $0x338] sm:$0xff]
    %v400 = vld [vmem:[#allocation8 + $0x340] sm:$0xff]
    %v401 = vld [vmem:[#allocation8 + $0x348] sm:$0xff]
    %v402 = vld [vmem:[#allocation8 + $0x350] sm:$0xff]
    %v403 = vld [vmem:[#allocation8 + $0x358] sm:$0xff]
    %v404 = vld [vmem:[#allocation8 + $0x360] sm:$0xff]
    %v405 = vld [vmem:[#allocation8 + $0x368] sm:$0xff]
    %v406 = vld [vmem:[#allocation8 + $0x370] sm:$0xff]
    %v407 = vld [vmem:[#allocation8 + $0x378] sm:$0xff]
    %v408 = vld [vmem:[#allocation8 + $0x380] sm:$0xff]
    %v409 = vld [vmem:[#allocation8 + $0x388] sm:$0xff]
    %v410 = vld [vmem:[#allocation8 + $0x390] sm:$0xff]
    %v411 = vld [vmem:[#allocation8 + $0x398] sm:$0xff]
    %v412 = vld [vmem:[#allocation8 + $0x3a0] sm:$0xff]
    %v413 = vld [vmem:[#allocation8 + $0x3a8] sm:$0xff]
    %v414 = vld [vmem:[#allocation8 + $0x3b0] sm:$0xff]
    %v415 = vld [vmem:[#allocation8 + $0x3b8] sm:$0xff]
    %v416 = vld [vmem:[#allocation8 + $0x3c0] sm:$0xff]
    %v417 = vld [vmem:[#allocation8 + $0x3c8] sm:$0xff]
    %v418 = vld [vmem:[#allocation8 + $0x3d0] sm:$0xff]
    %v419 = vld [vmem:[#allocation8 + $0x3d8] sm:$0xff]
    %v420 = vld [vmem:[#allocation8 + $0x3e0] sm:$0xff]
    %v421 = vld [vmem:[#allocation8 + $0x3e8] sm:$0xff]
    %v422 = vld [vmem:[#allocation8 + $0x3f0] sm:$0xff]
    %v423 = vld [vmem:[#allocation8 + $0x3f8] sm:$0xff]
    %v424 = vld [vmem:[%s4] sm:$0xf]
    %v426 = vlaneseq
    %v427 = vshrl.u32 %v426, 7
    %v428 = vsub.s32 0, %v427
    %v429 = vrot.slane %v424, %v428
    %v430 = vlaneseq
    %v431 = vshrl.u32 %v430, 7
    %v432 = vsub.s32 1, %v431
    %v433 = vrot.slane %v424, %v432
    %v434 = vlaneseq
    %v435 = vshrl.u32 %v434, 7
    %v436 = vsub.s32 2, %v435
    %v437 = vrot.slane %v424, %v436
    %v438 = vlaneseq
    %v439 = vshrl.u32 %v438, 7
    %v440 = vsub.s32 3, %v439
    %v441 = vrot.slane %v424, %v440
    %v574 = vunpack.c.l.b16 %v296
    %v575 = vunpack.c.h.b16 %v296
    %v576 = vunpack.c.l.b16 %v297
    %v577 = vunpack.c.h.b16 %v297
    %v578 = vunpack.c.l.b16 %v298
    %v579 = vunpack.c.h.b16 %v298
    %v580 = vunpack.c.l.b16 %v299
    %v581 = vunpack.c.h.b16 %v299
    %v582 = vunpack.c.l.b16 %v300
    %v583 = vunpack.c.h.b16 %v300
    %v584 = vunpack.c.l.b16 %v301
    %v585 = vunpack.c.h.b16 %v301
    %v586 = vunpack.c.l.b16 %v302
    %v587 = vunpack.c.h.b16 %v302
    %v588 = vunpack.c.l.b16 %v303
    %v589 = vunpack.c.h.b16 %v303
    %v590 = vunpack.c.l.b16 %v304
    %v591 = vunpack.c.h.b16 %v304
    %v592 = vunpack.c.l.b16 %v305
    %v593 = vunpack.c.h.b16 %v305
    %v594 = vunpack.c.l.b16 %v306
    %v595 = vunpack.c.h.b16 %v306
    %v596 = vunpack.c.l.b16 %v307
    %v597 = vunpack.c.h.b16 %v307
    %v598 = vunpack.c.l.b16 %v308
    %v599 = vunpack.c.h.b16 %v308
    %v600 = vunpack.c.l.b16 %v309
    %v601 = vunpack.c.h.b16 %v309
    %v602 = vunpack.c.l.b16 %v310
    %v603 = vunpack.c.h.b16 %v310
    %v604 = vunpack.c.l.b16 %v311
    %v605 = vunpack.c.h.b16 %v311
    %v606 = vunpack.c.l.b16 %v312
    %v607 = vunpack.c.h.b16 %v312
    %v608 = vunpack.c.l.b16 %v313
    %v609 = vunpack.c.h.b16 %v313
    %v610 = vunpack.c.l.b16 %v314
    %v611 = vunpack.c.h.b16 %v314
    %v612 = vunpack.c.l.b16 %v315
    %v613 = vunpack.c.h.b16 %v315
    %v614 = vunpack.c.l.b16 %v316
    %v615 = vunpack.c.h.b16 %v316
    %v616 = vunpack.c.l.b16 %v317
    %v617 = vunpack.c.h.b16 %v317
    %v618 = vunpack.c.l.b16 %v318
    %v619 = vunpack.c.h.b16 %v318
    %v620 = vunpack.c.l.b16 %v319
    %v621 = vunpack.c.h.b16 %v319
    %v622 = vunpack.c.l.b16 %v320
    %v623 = vunpack.c.h.b16 %v320
    %v624 = vunpack.c.l.b16 %v321
    %v625 = vunpack.c.h.b16 %v321
    %v626 = vunpack.c.l.b16 %v322
    %v627 = vunpack.c.h.b16 %v322
    %v628 = vunpack.c.l.b16 %v323
    %v629 = vunpack.c.h.b16 %v323
    %v630 = vunpack.c.l.b16 %v324
    %v631 = vunpack.c.h.b16 %v324
    %v632 = vunpack.c.l.b16 %v325
    %v633 = vunpack.c.h.b16 %v325
    %v634 = vunpack.c.l.b16 %v326
    %v635 = vunpack.c.h.b16 %v326
    %v636 = vunpack.c.l.b16 %v327
    %v637 = vunpack.c.h.b16 %v327
    %v638 = vunpack.c.l.b16 %v328
    %v639 = vunpack.c.h.b16 %v328
    %v640 = vunpack.c.l.b16 %v329
    %v641 = vunpack.c.h.b16 %v329
    %v642 = vunpack.c.l.b16 %v330
    %v643 = vunpack.c.h.b16 %v330
    %v644 = vunpack.c.l.b16 %v331
    %v645 = vunpack.c.h.b16 %v331
    %v646 = vunpack.c.l.b16 %v332
    %v647 = vunpack.c.h.b16 %v332
    %v648 = vunpack.c.l.b16 %v333
    %v649 = vunpack.c.h.b16 %v333
    %v650 = vunpack.c.l.b16 %v334
    %v651 = vunpack.c.h.b16 %v334
    %v652 = vunpack.c.l.b16 %v335
    %v653 = vunpack.c.h.b16 %v335
    %v654 = vunpack.c.l.b16 %v336
    %v655 = vunpack.c.h.b16 %v336
    %v656 = vunpack.c.l.b16 %v337
    %v657 = vunpack.c.h.b16 %v337
    %v658 = vunpack.c.l.b16 %v338
    %v659 = vunpack.c.h.b16 %v338
    %v660 = vunpack.c.l.b16 %v339
    %v661 = vunpack.c.h.b16 %v339
    %v662 = vunpack.c.l.b16 %v340
    %v663 = vunpack.c.h.b16 %v340
    %v664 = vunpack.c.l.b16 %v341
    %v665 = vunpack.c.h.b16 %v341
    %v666 = vunpack.c.l.b16 %v342
    %v667 = vunpack.c.h.b16 %v342
    %v668 = vunpack.c.l.b16 %v343
    %v669 = vunpack.c.h.b16 %v343
    %v670 = vunpack.c.l.b16 %v344
    %v671 = vunpack.c.h.b16 %v344
    %v672 = vunpack.c.l.b16 %v345
    %v673 = vunpack.c.h.b16 %v345
    %v674 = vunpack.c.l.b16 %v346
    %v675 = vunpack.c.h.b16 %v346
    %v676 = vunpack.c.l.b16 %v347
    %v677 = vunpack.c.h.b16 %v347
    %v678 = vunpack.c.l.b16 %v348
    %v679 = vunpack.c.h.b16 %v348
    %v680 = vunpack.c.l.b16 %v349
    %v681 = vunpack.c.h.b16 %v349
    %v682 = vunpack.c.l.b16 %v350
    %v683 = vunpack.c.h.b16 %v350
    %v684 = vunpack.c.l.b16 %v351
    %v685 = vunpack.c.h.b16 %v351
    %v686 = vunpack.c.l.b16 %v352
    %v687 = vunpack.c.h.b16 %v352
    %v688 = vunpack.c.l.b16 %v353
    %v689 = vunpack.c.h.b16 %v353
    %v690 = vunpack.c.l.b16 %v354
    %v691 = vunpack.c.h.b16 %v354
    %v692 = vunpack.c.l.b16 %v355
    %v693 = vunpack.c.h.b16 %v355
    %v694 = vunpack.c.l.b16 %v356
    %v695 = vunpack.c.h.b16 %v356
    %v696 = vunpack.c.l.b16 %v357
    %v697 = vunpack.c.h.b16 %v357
    %v698 = vunpack.c.l.b16 %v358
    %v699 = vunpack.c.h.b16 %v358
    %v700 = vunpack.c.l.b16 %v359
    %v701 = vunpack.c.h.b16 %v359
    %v702 = vunpack.c.l.b16 %v360
    %v703 = vunpack.c.h.b16 %v360
    %v704 = vunpack.c.l.b16 %v361
    %v705 = vunpack.c.h.b16 %v361
    %v706 = vunpack.c.l.b16 %v362
    %v707 = vunpack.c.h.b16 %v362
    %v708 = vunpack.c.l.b16 %v363
    %v709 = vunpack.c.h.b16 %v363
    %v710 = vunpack.c.l.b16 %v364
    %v711 = vunpack.c.h.b16 %v364
    %v712 = vunpack.c.l.b16 %v365
    %v713 = vunpack.c.h.b16 %v365
    %v714 = vunpack.c.l.b16 %v366
    %v715 = vunpack.c.h.b16 %v366
    %v716 = vunpack.c.l.b16 %v367
    %v717 = vunpack.c.h.b16 %v367
    %v718 = vunpack.c.l.b16 %v368
    %v719 = vunpack.c.h.b16 %v368
    %v720 = vunpack.c.l.b16 %v369
    %v721 = vunpack.c.h.b16 %v369
    %v722 = vunpack.c.l.b16 %v370
    %v723 = vunpack.c.h.b16 %v370
    %v724 = vunpack.c.l.b16 %v371
    %v725 = vunpack.c.h.b16 %v371
    %v726 = vunpack.c.l.b16 %v372
    %v727 = vunpack.c.h.b16 %v372
    %v728 = vunpack.c.l.b16 %v373
    %v729 = vunpack.c.h.b16 %v373
    %v730 = vunpack.c.l.b16 %v374
    %v731 = vunpack.c.h.b16 %v374
    %v732 = vunpack.c.l.b16 %v375
    %v733 = vunpack.c.h.b16 %v375
    %v734 = vunpack.c.l.b16 %v376
    %v735 = vunpack.c.h.b16 %v376
    %v736 = vunpack.c.l.b16 %v377
    %v737 = vunpack.c.h.b16 %v377
    %v738 = vunpack.c.l.b16 %v378
    %v739 = vunpack.c.h.b16 %v378
    %v740 = vunpack.c.l.b16 %v379
    %v741 = vunpack.c.h.b16 %v379
    %v742 = vunpack.c.l.b16 %v380
    %v743 = vunpack.c.h.b16 %v380
    %v744 = vunpack.c.l.b16 %v381
    %v745 = vunpack.c.h.b16 %v381
    %v746 = vunpack.c.l.b16 %v382
    %v747 = vunpack.c.h.b16 %v382
    %v748 = vunpack.c.l.b16 %v383
    %v749 = vunpack.c.h.b16 %v383
    %v750 = vunpack.c.l.b16 %v384
    %v751 = vunpack.c.h.b16 %v384
    %v752 = vunpack.c.l.b16 %v385
    %v753 = vunpack.c.h.b16 %v385
    %v754 = vunpack.c.l.b16 %v386
    %v755 = vunpack.c.h.b16 %v386
    %v756 = vunpack.c.l.b16 %v387
    %v757 = vunpack.c.h.b16 %v387
    %v758 = vunpack.c.l.b16 %v388
    %v759 = vunpack.c.h.b16 %v388
    %v760 = vunpack.c.l.b16 %v389
    %v761 = vunpack.c.h.b16 %v389
    %v762 = vunpack.c.l.b16 %v390
    %v763 = vunpack.c.h.b16 %v390
    %v764 = vunpack.c.l.b16 %v391
    %v765 = vunpack.c.h.b16 %v391
    %v766 = vunpack.c.l.b16 %v392
    %v767 = vunpack.c.h.b16 %v392
    %v768 = vunpack.c.l.b16 %v393
    %v769 = vunpack.c.h.b16 %v393
    %v770 = vunpack.c.l.b16 %v394
    %v771 = vunpack.c.h.b16 %v394
    %v772 = vunpack.c.l.b16 %v395
    %v773 = vunpack.c.h.b16 %v395
    %v774 = vunpack.c.l.b16 %v396
    %v775 = vunpack.c.h.b16 %v396
    %v776 = vunpack.c.l.b16 %v397
    %v777 = vunpack.c.h.b16 %v397
    %v778 = vunpack.c.l.b16 %v398
    %v779 = vunpack.c.h.b16 %v398
    %v780 = vunpack.c.l.b16 %v399
    %v781 = vunpack.c.h.b16 %v399
    %v782 = vunpack.c.l.b16 %v400
    %v783 = vunpack.c.h.b16 %v400
    %v784 = vunpack.c.l.b16 %v401
    %v785 = vunpack.c.h.b16 %v401
    %v786 = vunpack.c.l.b16 %v402
    %v787 = vunpack.c.h.b16 %v402
    %v788 = vunpack.c.l.b16 %v403
    %v789 = vunpack.c.h.b16 %v403
    %v790 = vunpack.c.l.b16 %v404
    %v791 = vunpack.c.h.b16 %v404
    %v792 = vunpack.c.l.b16 %v405
    %v793 = vunpack.c.h.b16 %v405
    %v794 = vunpack.c.l.b16 %v406
    %v795 = vunpack.c.h.b16 %v406
    %v796 = vunpack.c.l.b16 %v407
    %v797 = vunpack.c.h.b16 %v407
    %v798 = vunpack.c.l.b16 %v408
    %v799 = vunpack.c.h.b16 %v408
    %v800 = vunpack.c.l.b16 %v409
    %v801 = vunpack.c.h.b16 %v409
    %v802 = vunpack.c.l.b16 %v410
    %v803 = vunpack.c.h.b16 %v410
    %v804 = vunpack.c.l.b16 %v411
    %v805 = vunpack.c.h.b16 %v411
    %v806 = vunpack.c.l.b16 %v412
    %v807 = vunpack.c.h.b16 %v412
    %v808 = vunpack.c.l.b16 %v413
    %v809 = vunpack.c.h.b16 %v413
    %v810 = vunpack.c.l.b16 %v414
    %v811 = vunpack.c.h.b16 %v414
    %v812 = vunpack.c.l.b16 %v415
    %v813 = vunpack.c.h.b16 %v415
    %v814 = vunpack.c.l.b16 %v416
    %v815 = vunpack.c.h.b16 %v416
    %v816 = vunpack.c.l.b16 %v417
    %v817 = vunpack.c.h.b16 %v417
    %v818 = vunpack.c.l.b16 %v418
    %v819 = vunpack.c.h.b16 %v418
    %v820 = vunpack.c.l.b16 %v419
    %v821 = vunpack.c.h.b16 %v419
    %v822 = vunpack.c.l.b16 %v420
    %v823 = vunpack.c.h.b16 %v420
    %v824 = vunpack.c.l.b16 %v421
    %v825 = vunpack.c.h.b16 %v421
    %v826 = vunpack.c.l.b16 %v422
    %v827 = vunpack.c.h.b16 %v422
    %v828 = vunpack.c.l.b16 %v423
    %v829 = vunpack.c.h.b16 %v423
    %v830 = vpack.c.b16 %v578, %v574
    %v831 = vpack.c.b16 %v579, %v575
    %v832 = vpack.c.b16 %v580, %v576
    %v833 = vpack.c.b16 %v581, %v577
    %v834 = vpack.c.b16 %v586, %v582
    %v835 = vpack.c.b16 %v587, %v583
    %v836 = vpack.c.b16 %v588, %v584
    %v837 = vpack.c.b16 %v589, %v585
    %v838 = vpack.c.b16 %v594, %v590
    %v839 = vpack.c.b16 %v595, %v591
    %v840 = vpack.c.b16 %v596, %v592
    %v841 = vpack.c.b16 %v597, %v593
    %v842 = vpack.c.b16 %v602, %v598
    %v843 = vpack.c.b16 %v603, %v599
    %v844 = vpack.c.b16 %v604, %v600
    %v845 = vpack.c.b16 %v605, %v601
    %v846 = vpack.c.b16 %v610, %v606
    %v847 = vpack.c.b16 %v611, %v607
    %v848 = vpack.c.b16 %v612, %v608
    %v849 = vpack.c.b16 %v613, %v609
    %v850 = vpack.c.b16 %v618, %v614
    %v851 = vpack.c.b16 %v619, %v615
    %v852 = vpack.c.b16 %v620, %v616
    %v853 = vpack.c.b16 %v621, %v617
    %v854 = vpack.c.b16 %v626, %v622
    %v855 = vpack.c.b16 %v627, %v623
    %v856 = vpack.c.b16 %v628, %v624
    %v857 = vpack.c.b16 %v629, %v625
    %v858 = vpack.c.b16 %v634, %v630
    %v859 = vpack.c.b16 %v635, %v631
    %v860 = vpack.c.b16 %v636, %v632
    %v861 = vpack.c.b16 %v637, %v633
    %v862 = vpack.c.b16 %v642, %v638
    %v863 = vpack.c.b16 %v643, %v639
    %v864 = vpack.c.b16 %v644, %v640
    %v865 = vpack.c.b16 %v645, %v641
    %v866 = vpack.c.b16 %v650, %v646
    %v867 = vpack.c.b16 %v651, %v647
    %v868 = vpack.c.b16 %v652, %v648
    %v869 = vpack.c.b16 %v653, %v649
    %v870 = vpack.c.b16 %v658, %v654
    %v871 = vpack.c.b16 %v659, %v655
    %v872 = vpack.c.b16 %v660, %v656
    %v873 = vpack.c.b16 %v661, %v657
    %v874 = vpack.c.b16 %v666, %v662
    %v875 = vpack.c.b16 %v667, %v663
    %v876 = vpack.c.b16 %v668, %v664
    %v877 = vpack.c.b16 %v669, %v665
    %v878 = vpack.c.b16 %v674, %v670
    %v879 = vpack.c.b16 %v675, %v671
    %v880 = vpack.c.b16 %v676, %v672
    %v881 = vpack.c.b16 %v677, %v673
    %v882 = vpack.c.b16 %v682, %v678
    %v883 = vpack.c.b16 %v683, %v679
    %v884 = vpack.c.b16 %v684, %v680
    %v885 = vpack.c.b16 %v685, %v681
    %v886 = vpack.c.b16 %v690, %v686
    %v887 = vpack.c.b16 %v691, %v687
    %v888 = vpack.c.b16 %v692, %v688
    %v889 = vpack.c.b16 %v693, %v689
    %v890 = vpack.c.b16 %v698, %v694
    %v891 = vpack.c.b16 %v699, %v695
    %v892 = vpack.c.b16 %v700, %v696
    %v893 = vpack.c.b16 %v701, %v697
    %v894 = vpack.c.b16 %v706, %v702
    %v895 = vpack.c.b16 %v707, %v703
    %v896 = vpack.c.b16 %v708, %v704
    %v897 = vpack.c.b16 %v709, %v705
    %v898 = vpack.c.b16 %v714, %v710
    %v899 = vpack.c.b16 %v715, %v711
    %v900 = vpack.c.b16 %v716, %v712
    %v901 = vpack.c.b16 %v717, %v713
    %v902 = vpack.c.b16 %v722, %v718
    %v903 = vpack.c.b16 %v723, %v719
    %v904 = vpack.c.b16 %v724, %v720
    %v905 = vpack.c.b16 %v725, %v721
    %v906 = vpack.c.b16 %v730, %v726
    %v907 = vpack.c.b16 %v731, %v727
    %v908 = vpack.c.b16 %v732, %v728
    %v909 = vpack.c.b16 %v733, %v729
    %v910 = vpack.c.b16 %v738, %v734
    %v911 = vpack.c.b16 %v739, %v735
    %v912 = vpack.c.b16 %v740, %v736
    %v913 = vpack.c.b16 %v741, %v737
    %v914 = vpack.c.b16 %v746, %v742
    %v915 = vpack.c.b16 %v747, %v743
    %v916 = vpack.c.b16 %v748, %v744
    %v917 = vpack.c.b16 %v749, %v745
    %v918 = vpack.c.b16 %v754, %v750
    %v919 = vpack.c.b16 %v755, %v751
    %v920 = vpack.c.b16 %v756, %v752
    %v921 = vpack.c.b16 %v757, %v753
    %v922 = vpack.c.b16 %v762, %v758
    %v923 = vpack.c.b16 %v763, %v759
    %v924 = vpack.c.b16 %v764, %v760
    %v925 = vpack.c.b16 %v765, %v761
    %v926 = vpack.c.b16 %v770, %v766
    %v927 = vpack.c.b16 %v771, %v767
    %v928 = vpack.c.b16 %v772, %v768
    %v929 = vpack.c.b16 %v773, %v769
    %v930 = vpack.c.b16 %v778, %v774
    %v931 = vpack.c.b16 %v779, %v775
    %v932 = vpack.c.b16 %v780, %v776
    %v933 = vpack.c.b16 %v781, %v777
    %v934 = vpack.c.b16 %v786, %v782
    %v935 = vpack.c.b16 %v787, %v783
    %v936 = vpack.c.b16 %v788, %v784
    %v937 = vpack.c.b16 %v789, %v785
    %v938 = vpack.c.b16 %v794, %v790
    %v939 = vpack.c.b16 %v795, %v791
    %v940 = vpack.c.b16 %v796, %v792
    %v941 = vpack.c.b16 %v797, %v793
    %v942 = vpack.c.b16 %v802, %v798
    %v943 = vpack.c.b16 %v803, %v799
    %v944 = vpack.c.b16 %v804, %v800
    %v945 = vpack.c.b16 %v805, %v801
    %v946 = vpack.c.b16 %v810, %v806
    %v947 = vpack.c.b16 %v811, %v807
    %v948 = vpack.c.b16 %v812, %v808
    %v949 = vpack.c.b16 %v813, %v809
    %v950 = vpack.c.b16 %v818, %v814
    %v951 = vpack.c.b16 %v819, %v815
    %v952 = vpack.c.b16 %v820, %v816
    %v953 = vpack.c.b16 %v821, %v817
    %v954 = vpack.c.b16 %v826, %v822
    %v955 = vpack.c.b16 %v827, %v823
    %v956 = vpack.c.b16 %v828, %v824
    %v957 = vpack.c.b16 %v829, %v825
    %1086 = vmatprep.subr.bf16.mxu0 %v859
    %1087 = vmatpush1.bf16.msra.mxu0 %v858
    %1088 = vmatprep.subr.bf16.mxu0 %v855
    %1089 = vmatpush1.bf16.msra.mxu0 %v854
    %1090 = vmatprep.subr.bf16.mxu0 %v851
    %1091 = vmatpush1.bf16.msra.mxu0 %v850
    %1092 = vmatprep.subr.bf16.mxu0 %v847
    %1093 = vmatpush1.bf16.msra.mxu0 %v846
    %1094 = vmatprep.subr.bf16.mxu0 %v843
    %1095 = vmatpush1.bf16.msra.mxu0 %v842
    %1096 = vmatprep.subr.bf16.mxu0 %v839
    %1097 = vmatpush1.bf16.msra.mxu0 %v838
    %1098 = vmatprep.subr.bf16.mxu0 %v835
    %1099 = vmatpush1.bf16.msra.mxu0 %v834
    %1100 = vmatprep.subr.bf16.mxu0 %v831
    %1101 = vmatpush1.bf16.msra.mxu0 %v830
    %1102 = vmatprep.subr.bf16.mxu0 %v891
    %1103 = vmatpush2.bf16.msra.mxu0 %v890
    %1104 = vmatprep.subr.bf16.mxu0 %v887
    %1105 = vmatpush2.bf16.msra.mxu0 %v886
    %1106 = vmatprep.subr.bf16.mxu0 %v883
    %1107 = vmatpush2.bf16.msra.mxu0 %v882
    %1108 = vmatprep.subr.bf16.mxu0 %v879
    %1109 = vmatpush2.bf16.msra.mxu0 %v878
    %1110 = vmatprep.subr.bf16.mxu0 %v875
    %1111 = vmatpush2.bf16.msra.mxu0 %v874
    %1112 = vmatprep.subr.bf16.mxu0 %v871
    %1113 = vmatpush2.bf16.msra.mxu0 %v870
    %1114 = vmatprep.subr.bf16.mxu0 %v867
    %1115 = vmatpush2.bf16.msra.mxu0 %v866
    %1116 = vmatprep.subr.bf16.mxu0 %v863
    %1117 = vmatpush2.bf16.msra.mxu0 %v862
    %1118 = vmatprep.mubr.bf16.mxu0 %v293
    %1119 = vmatmul.mubr.bf16.gmra.mxu0 %v292
    %v1120 = vpop.f32.mrf.mxu0
    %v1121 = vadd.f32 %v429, %v1120
    %v1122 = vpop.f32.mrf.mxu0
    %v1123 = vadd.f32 %v433, %v1122
    %v1124 = vpop.f32.mrf.mxu0
    %v1125 = vpop.f32.mrf.mxu0
    %1126 = vdwg.mxu0
    %1127 = vmatprep.subr.bf16.mxu0 %v923
    %1128 = vmatpush1.bf16.msra.mxu0 %v922
    %1129 = vmatprep.subr.bf16.mxu0 %v919
    %1130 = vmatpush1.bf16.msra.mxu0 %v918
    %1131 = vmatprep.subr.bf16.mxu0 %v915
    %1132 = vmatpush1.bf16.msra.mxu0 %v914
    %1133 = vmatprep.subr.bf16.mxu0 %v911
    %1134 = vmatpush1.bf16.msra.mxu0 %v910
    %1135 = vmatprep.subr.bf16.mxu0 %v907
    %1136 = vmatpush1.bf16.msra.mxu0 %v906
    %1137 = vmatprep.subr.bf16.mxu0 %v903
    %1138 = vmatpush1.bf16.msra.mxu0 %v902
    %1139 = vmatprep.subr.bf16.mxu0 %v899
    %1140 = vmatpush1.bf16.msra.mxu0 %v898
    %1141 = vmatprep.subr.bf16.mxu0 %v895
    %1142 = vmatpush1.bf16.msra.mxu0 %v894
    %1143 = vmatprep.subr.bf16.mxu0 %v955
    %1144 = vmatpush2.bf16.msra.mxu0 %v954
    %1145 = vmatprep.subr.bf16.mxu0 %v951
    %1146 = vmatpush2.bf16.msra.mxu0 %v950
    %1147 = vmatprep.subr.bf16.mxu0 %v947
    %1148 = vmatpush2.bf16.msra.mxu0 %v946
    %1149 = vmatprep.subr.bf16.mxu0 %v943
    %1150 = vmatpush2.bf16.msra.mxu0 %v942
    %1151 = vmatprep.subr.bf16.mxu0 %v939
    %1152 = vmatpush2.bf16.msra.mxu0 %v938
    %1153 = vmatprep.subr.bf16.mxu0 %v935
    %1154 = vmatpush2.bf16.msra.mxu0 %v934
    %1155 = vmatprep.subr.bf16.mxu0 %v931
    %1156 = vmatpush2.bf16.msra.mxu0 %v930
    %1157 = vmatprep.subr.bf16.mxu0 %v927
    %1158 = vmatpush2.bf16.msra.mxu0 %v926
    %1159 = vmatprep.mubr.bf16.mxu0 %v295
    %1160 = vmatmul.mubr.bf16.gmra.mxu0 %v294
    %v1161 = vpop.f32.mrf.mxu0
    %v1162 = vadd.f32 %v1121, %v1161
    %v1163 = vpop.f32.mrf.mxu0
    %v1164 = vadd.f32 %v1123, %v1163
    %v1165 = vpop.f32.mrf.mxu0
    %v1166 = vpop.f32.mrf.mxu0
    %1167 = vdwg.mxu0
    %1168 = vmatprep.subr.bf16.mxu0 %v861
    %1169 = vmatpush1.bf16.msra.mxu0 %v860
    %1170 = vmatprep.subr.bf16.mxu0 %v857
    %1171 = vmatpush1.bf16.msra.mxu0 %v856
    %1172 = vmatprep.subr.bf16.mxu0 %v853
    %1173 = vmatpush1.bf16.msra.mxu0 %v852
    %1174 = vmatprep.subr.bf16.mxu0 %v849
    %1175 = vmatpush1.bf16.msra.mxu0 %v848
    %1176 = vmatprep.subr.bf16.mxu0 %v845
    %1177 = vmatpush1.bf16.msra.mxu0 %v844
    %1178 = vmatprep.subr.bf16.mxu0 %v841
    %1179 = vmatpush1.bf16.msra.mxu0 %v840
    %1180 = vmatprep.subr.bf16.mxu0 %v837
    %1181 = vmatpush1.bf16.msra.mxu0 %v836
    %1182 = vmatprep.subr.bf16.mxu0 %v833
    %1183 = vmatpush1.bf16.msra.mxu0 %v832
    %1184 = vmatprep.subr.bf16.mxu0 %v893
    %1185 = vmatpush2.bf16.msra.mxu0 %v892
    %1186 = vmatprep.subr.bf16.mxu0 %v889
    %1187 = vmatpush2.bf16.msra.mxu0 %v888
    %1188 = vmatprep.subr.bf16.mxu0 %v885
    %1189 = vmatpush2.bf16.msra.mxu0 %v884
    %1190 = vmatprep.subr.bf16.mxu0 %v881
    %1191 = vmatpush2.bf16.msra.mxu0 %v880
    %1192 = vmatprep.subr.bf16.mxu0 %v877
    %1193 = vmatpush2.bf16.msra.mxu0 %v876
    %1194 = vmatprep.subr.bf16.mxu0 %v873
    %1195 = vmatpush2.bf16.msra.mxu0 %v872
    %1196 = vmatprep.subr.bf16.mxu0 %v869
    %1197 = vmatpush2.bf16.msra.mxu0 %v868
    %1198 = vmatprep.subr.bf16.mxu0 %v865
    %1199 = vmatpush2.bf16.msra.mxu0 %v864
    %1200 = vmatprep.mubr.bf16.mxu0 %v293
    %1201 = vmatmul.mubr.bf16.gmra.mxu0 %v292
    %v1202 = vpop.f32.mrf.mxu0
    %v1203 = vadd.f32 %v437, %v1202
    %v1204 = vpop.f32.mrf.mxu0
    %v1205 = vadd.f32 %v441, %v1204
    %v1206 = vpop.f32.mrf.mxu0
    %v1207 = vpop.f32.mrf.mxu0
    %1208 = vdwg.mxu0
    %1209 = vmatprep.subr.bf16.mxu0 %v925
    %1210 = vmatpush1.bf16.msra.mxu0 %v924
    %1211 = vmatprep.subr.bf16.mxu0 %v921
    %1212 = vmatpush1.bf16.msra.mxu0 %v920
    %1213 = vmatprep.subr.bf16.mxu0 %v917
    %1214 = vmatpush1.bf16.msra.mxu0 %v916
    %1215 = vmatprep.subr.bf16.mxu0 %v913
    %1216 = vmatpush1.bf16.msra.mxu0 %v912
    %1217 = vmatprep.subr.bf16.mxu0 %v909
    %1218 = vmatpush1.bf16.msra.mxu0 %v908
    %1219 = vmatprep.subr.bf16.mxu0 %v905
    %1220 = vmatpush1.bf16.msra.mxu0 %v904
    %1221 = vmatprep.subr.bf16.mxu0 %v901
    %1222 = vmatpush1.bf16.msra.mxu0 %v900
    %1223 = vmatprep.subr.bf16.mxu0 %v897
    %1224 = vmatpush1.bf16.msra.mxu0 %v896
    %1225 = vmatprep.subr.bf16.mxu0 %v957
    %1226 = vmatpush2.bf16.msra.mxu0 %v956
    %1227 = vmatprep.subr.bf16.mxu0 %v953
    %1228 = vmatpush2.bf16.msra.mxu0 %v952
    %1229 = vmatprep.subr.bf16.mxu0 %v949
    %1230 = vmatpush2.bf16.msra.mxu0 %v948
    %1231 = vmatprep.subr.bf16.mxu0 %v945
    %1232 = vmatpush2.bf16.msra.mxu0 %v944
    %1233 = vmatprep.subr.bf16.mxu0 %v941
    %1234 = vmatpush2.bf16.msra.mxu0 %v940
    %1235 = vmatprep.subr.bf16.mxu0 %v937
    %1236 = vmatpush2.bf16.msra.mxu0 %v936
    %1237 = vmatprep.subr.bf16.mxu0 %v933
    %1238 = vmatpush2.bf16.msra.mxu0 %v932
    %1239 = vmatprep.subr.bf16.mxu0 %v929
    %1240 = vmatpush2.bf16.msra.mxu0 %v928
    %1241 = vmatprep.mubr.bf16.mxu0 %v295
    %1242 = vmatmul.mubr.bf16.gmra.mxu0 %v294
    %v1243 = vpop.f32.mrf.mxu0
    %v1244 = vadd.f32 %v1203, %v1243
    %v1245 = vpop.f32.mrf.mxu0
    %v1246 = vadd.f32 %v1205, %v1245
    %v1247 = vpop.f32.mrf.mxu0
    %v1248 = vpop.f32.mrf.mxu0
    %1249 = vdwg.mxu0
    %v1250 = vmax.f32 %v1162, 0.0
    %v1251 = vmax.f32 %v1164, 0.0
    %v1252 = vmax.f32 %v1244, 0.0
    %v1253 = vmax.f32 %v1246, 0.0
    %v1254 = vpack.c.bf16 %v1250, %v1250
    %v1255 = vpack.c.bf16 %v1251, %v1251
    %v1256 = vpack.c.bf16 %v1252, %v1252
    %v1257 = vpack.c.bf16 %v1253, %v1253
    %v1258 = vld [vmem:[#allocation10] sm:$0xff]
    %v1259 = vld [vmem:[#allocation10 + $0x8] sm:$0xff]
    %v1260 = vld [vmem:[#allocation10 + $0x10] sm:$0xff]
    %v1261 = vld [vmem:[#allocation10 + $0x18] sm:$0xff]
    %v1262 = vld [vmem:[#allocation10 + $0x20] sm:$0xff]
    %v1263 = vld [vmem:[#allocation10 + $0x28] sm:$0xff]
    %v1264 = vld [vmem:[#allocation10 + $0x30] sm:$0xff]
    %v1265 = vld [vmem:[#allocation10 + $0x38] sm:$0xff]
    %v1266 = vld [vmem:[#allocation10 + $0x40] sm:$0xff]
    %v1267 = vld [vmem:[#allocation10 + $0x48] sm:$0xff]
    %v1268 = vld [vmem:[#allocation10 + $0x50] sm:$0xff]
    %v1269 = vld [vmem:[#allocation10 + $0x58] sm:$0xff]
    %v1270 = vld [vmem:[#allocation10 + $0x60] sm:$0xff]
    %v1271 = vld [vmem:[#allocation10 + $0x68] sm:$0xff]
    %v1272 = vld [vmem:[#allocation10 + $0x70] sm:$0xff]
    %v1273 = vld [vmem:[#allocation10 + $0x78] sm:$0xff]
    %v1274 = vld [vmem:[#allocation10 + $0x80] sm:$0xff]
    %v1275 = vld [vmem:[#allocation10 + $0x88] sm:$0xff]
    %v1276 = vld [vmem:[#allocation10 + $0x90] sm:$0xff]
    %v1277 = vld [vmem:[#allocation10 + $0x98] sm:$0xff]
    %v1278 = vld [vmem:[#allocation10 + $0xa0] sm:$0xff]
    %v1279 = vld [vmem:[#allocation10 + $0xa8] sm:$0xff]
    %v1280 = vld [vmem:[#allocation10 + $0xb0] sm:$0xff]
    %v1281 = vld [vmem:[#allocation10 + $0xb8] sm:$0xff]
    %v1282 = vld [vmem:[#allocation10 + $0xc0] sm:$0xff]
    %v1283 = vld [vmem:[#allocation10 + $0xc8] sm:$0xff]
    %v1284 = vld [vmem:[#allocation10 + $0xd0] sm:$0xff]
    %v1285 = vld [vmem:[#allocation10 + $0xd8] sm:$0xff]
    %v1286 = vld [vmem:[#allocation10 + $0xe0] sm:$0xff]
    %v1287 = vld [vmem:[#allocation10 + $0xe8] sm:$0xff]
    %v1288 = vld [vmem:[#allocation10 + $0xf0] sm:$0xff]
    %v1289 = vld [vmem:[#allocation10 + $0xf8] sm:$0xff]
    %v1290 = vld [vmem:[#allocation10 + $0x100] sm:$0xff]
    %v1291 = vld [vmem:[#allocation10 + $0x108] sm:$0xff]
    %v1292 = vld [vmem:[#allocation10 + $0x110] sm:$0xff]
    %v1293 = vld [vmem:[#allocation10 + $0x118] sm:$0xff]
    %v1294 = vld [vmem:[#allocation10 + $0x120] sm:$0xff]
    %v1295 = vld [vmem:[#allocation10 + $0x128] sm:$0xff]
    %v1296 = vld [vmem:[#allocation10 + $0x130] sm:$0xff]
    %v1297 = vld [vmem:[#allocation10 + $0x138] sm:$0xff]
    %v1298 = vld [vmem:[#allocation10 + $0x140] sm:$0xff]
    %v1299 = vld [vmem:[#allocation10 + $0x148] sm:$0xff]
    %v1300 = vld [vmem:[#allocation10 + $0x150] sm:$0xff]
    %v1301 = vld [vmem:[#allocation10 + $0x158] sm:$0xff]
    %v1302 = vld [vmem:[#allocation10 + $0x160] sm:$0xff]
    %v1303 = vld [vmem:[#allocation10 + $0x168] sm:$0xff]
    %v1304 = vld [vmem:[#allocation10 + $0x170] sm:$0xff]
    %v1305 = vld [vmem:[#allocation10 + $0x178] sm:$0xff]
    %v1306 = vld [vmem:[#allocation10 + $0x180] sm:$0xff]
    %v1307 = vld [vmem:[#allocation10 + $0x188] sm:$0xff]
    %v1308 = vld [vmem:[#allocation10 + $0x190] sm:$0xff]
    %v1309 = vld [vmem:[#allocation10 + $0x198] sm:$0xff]
    %v1310 = vld [vmem:[#allocation10 + $0x1a0] sm:$0xff]
    %v1311 = vld [vmem:[#allocation10 + $0x1a8] sm:$0xff]
    %v1312 = vld [vmem:[#allocation10 + $0x1b0] sm:$0xff]
    %v1313 = vld [vmem:[#allocation10 + $0x1b8] sm:$0xff]
    %v1314 = vld [vmem:[#allocation10 + $0x1c0] sm:$0xff]
    %v1315 = vld [vmem:[#allocation10 + $0x1c8] sm:$0xff]
    %v1316 = vld [vmem:[#allocation10 + $0x1d0] sm:$0xff]
    %v1317 = vld [vmem:[#allocation10 + $0x1d8] sm:$0xff]
    %v1318 = vld [vmem:[#allocation10 + $0x1e0] sm:$0xff]
    %v1319 = vld [vmem:[#allocation10 + $0x1e8] sm:$0xff]
    %v1320 = vld [vmem:[#allocation10 + $0x1f0] sm:$0xff]
    %v1321 = vld [vmem:[#allocation10 + $0x1f8] sm:$0xff]
    %v1322 = vld [vmem:[%s6] sm:$0x3]
    %v1324 = vlaneseq
    %v1325 = vshrl.u32 %v1324, 7
    %v1326 = vsub.s32 0, %v1325
    %v1327 = vrot.slane %v1322, %v1326
    %v1328 = vlaneseq
    %v1329 = vshrl.u32 %v1328, 7
    %v1330 = vsub.s32 1, %v1329
    %v1331 = vrot.slane %v1322, %v1330
    %v1398 = vunpack.c.l.b16 %v1258
    %v1399 = vunpack.c.h.b16 %v1258
    %v1400 = vunpack.c.l.b16 %v1259
    %v1401 = vunpack.c.h.b16 %v1259
    %v1402 = vunpack.c.l.b16 %v1260
    %v1403 = vunpack.c.h.b16 %v1260
    %v1404 = vunpack.c.l.b16 %v1261
    %v1405 = vunpack.c.h.b16 %v1261
    %v1406 = vunpack.c.l.b16 %v1262
    %v1407 = vunpack.c.h.b16 %v1262
    %v1408 = vunpack.c.l.b16 %v1263
    %v1409 = vunpack.c.h.b16 %v1263
    %v1410 = vunpack.c.l.b16 %v1264
    %v1411 = vunpack.c.h.b16 %v1264
    %v1412 = vunpack.c.l.b16 %v1265
    %v1413 = vunpack.c.h.b16 %v1265
    %v1414 = vunpack.c.l.b16 %v1266
    %v1415 = vunpack.c.h.b16 %v1266
    %v1416 = vunpack.c.l.b16 %v1267
    %v1417 = vunpack.c.h.b16 %v1267
    %v1418 = vunpack.c.l.b16 %v1268
    %v1419 = vunpack.c.h.b16 %v1268
    %v1420 = vunpack.c.l.b16 %v1269
    %v1421 = vunpack.c.h.b16 %v1269
    %v1422 = vunpack.c.l.b16 %v1270
    %v1423 = vunpack.c.h.b16 %v1270
    %v1424 = vunpack.c.l.b16 %v1271
    %v1425 = vunpack.c.h.b16 %v1271
    %v1426 = vunpack.c.l.b16 %v1272
    %v1427 = vunpack.c.h.b16 %v1272
    %v1428 = vunpack.c.l.b16 %v1273
    %v1429 = vunpack.c.h.b16 %v1273
    %v1430 = vunpack.c.l.b16 %v1274
    %v1431 = vunpack.c.h.b16 %v1274
    %v1432 = vunpack.c.l.b16 %v1275
    %v1433 = vunpack.c.h.b16 %v1275
    %v1434 = vunpack.c.l.b16 %v1276
    %v1435 = vunpack.c.h.b16 %v1276
    %v1436 = vunpack.c.l.b16 %v1277
    %v1437 = vunpack.c.h.b16 %v1277
    %v1438 = vunpack.c.l.b16 %v1278
    %v1439 = vunpack.c.h.b16 %v1278
    %v1440 = vunpack.c.l.b16 %v1279
    %v1441 = vunpack.c.h.b16 %v1279
    %v1442 = vunpack.c.l.b16 %v1280
    %v1443 = vunpack.c.h.b16 %v1280
    %v1444 = vunpack.c.l.b16 %v1281
    %v1445 = vunpack.c.h.b16 %v1281
    %v1446 = vunpack.c.l.b16 %v1282
    %v1447 = vunpack.c.h.b16 %v1282
    %v1448 = vunpack.c.l.b16 %v1283
    %v1449 = vunpack.c.h.b16 %v1283
    %v1450 = vunpack.c.l.b16 %v1284
    %v1451 = vunpack.c.h.b16 %v1284
    %v1452 = vunpack.c.l.b16 %v1285
    %v1453 = vunpack.c.h.b16 %v1285
    %v1454 = vunpack.c.l.b16 %v1286
    %v1455 = vunpack.c.h.b16 %v1286
    %v1456 = vunpack.c.l.b16 %v1287
    %v1457 = vunpack.c.h.b16 %v1287
    %v1458 = vunpack.c.l.b16 %v1288
    %v1459 = vunpack.c.h.b16 %v1288
    %v1460 = vunpack.c.l.b16 %v1289
    %v1461 = vunpack.c.h.b16 %v1289
    %v1462 = vunpack.c.l.b16 %v1290
    %v1463 = vunpack.c.h.b16 %v1290
    %v1464 = vunpack.c.l.b16 %v1291
    %v1465 = vunpack.c.h.b16 %v1291
    %v1466 = vunpack.c.l.b16 %v1292
    %v1467 = vunpack.c.h.b16 %v1292
    %v1468 = vunpack.c.l.b16 %v1293
    %v1469 = vunpack.c.h.b16 %v1293
    %v1470 = vunpack.c.l.b16 %v1294
    %v1471 = vunpack.c.h.b16 %v1294
    %v1472 = vunpack.c.l.b16 %v1295
    %v1473 = vunpack.c.h.b16 %v1295
    %v1474 = vunpack.c.l.b16 %v1296
    %v1475 = vunpack.c.h.b16 %v1296
    %v1476 = vunpack.c.l.b16 %v1297
    %v1477 = vunpack.c.h.b16 %v1297
    %v1478 = vunpack.c.l.b16 %v1298
    %v1479 = vunpack.c.h.b16 %v1298
    %v1480 = vunpack.c.l.b16 %v1299
    %v1481 = vunpack.c.h.b16 %v1299
    %v1482 = vunpack.c.l.b16 %v1300
    %v1483 = vunpack.c.h.b16 %v1300
    %v1484 = vunpack.c.l.b16 %v1301
    %v1485 = vunpack.c.h.b16 %v1301
    %v1486 = vunpack.c.l.b16 %v1302
    %v1487 = vunpack.c.h.b16 %v1302
    %v1488 = vunpack.c.l.b16 %v1303
    %v1489 = vunpack.c.h.b16 %v1303
    %v1490 = vunpack.c.l.b16 %v1304
    %v1491 = vunpack.c.h.b16 %v1304
    %v1492 = vunpack.c.l.b16 %v1305
    %v1493 = vunpack.c.h.b16 %v1305
    %v1494 = vunpack.c.l.b16 %v1306
    %v1495 = vunpack.c.h.b16 %v1306
    %v1496 = vunpack.c.l.b16 %v1307
    %v1497 = vunpack.c.h.b16 %v1307
    %v1498 = vunpack.c.l.b16 %v1308
    %v1499 = vunpack.c.h.b16 %v1308
    %v1500 = vunpack.c.l.b16 %v1309
    %v1501 = vunpack.c.h.b16 %v1309
    %v1502 = vunpack.c.l.b16 %v1310
    %v1503 = vunpack.c.h.b16 %v1310
    %v1504 = vunpack.c.l.b16 %v1311
    %v1505 = vunpack.c.h.b16 %v1311
    %v1506 = vunpack.c.l.b16 %v1312
    %v1507 = vunpack.c.h.b16 %v1312
    %v1508 = vunpack.c.l.b16 %v1313
    %v1509 = vunpack.c.h.b16 %v1313
    %v1510 = vunpack.c.l.b16 %v1314
    %v1511 = vunpack.c.h.b16 %v1314
    %v1512 = vunpack.c.l.b16 %v1315
    %v1513 = vunpack.c.h.b16 %v1315
    %v1514 = vunpack.c.l.b16 %v1316
    %v1515 = vunpack.c.h.b16 %v1316
    %v1516 = vunpack.c.l.b16 %v1317
    %v1517 = vunpack.c.h.b16 %v1317
    %v1518 = vunpack.c.l.b16 %v1318
    %v1519 = vunpack.c.h.b16 %v1318
    %v1520 = vunpack.c.l.b16 %v1319
    %v1521 = vunpack.c.h.b16 %v1319
    %v1522 = vunpack.c.l.b16 %v1320
    %v1523 = vunpack.c.h.b16 %v1320
    %v1524 = vunpack.c.l.b16 %v1321
    %v1525 = vunpack.c.h.b16 %v1321
    %v1526 = vpack.c.b16 %v1400, %v1398
    %v1527 = vpack.c.b16 %v1401, %v1399
    %v1528 = vpack.c.b16 %v1404, %v1402
    %v1529 = vpack.c.b16 %v1405, %v1403
    %v1530 = vpack.c.b16 %v1408, %v1406
    %v1531 = vpack.c.b16 %v1409, %v1407
    %v1532 = vpack.c.b16 %v1412, %v1410
    %v1533 = vpack.c.b16 %v1413, %v1411
    %v1534 = vpack.c.b16 %v1416, %v1414
    %v1535 = vpack.c.b16 %v1417, %v1415
    %v1536 = vpack.c.b16 %v1420, %v1418
    %v1537 = vpack.c.b16 %v1421, %v1419
    %v1538 = vpack.c.b16 %v1424, %v1422
    %v1539 = vpack.c.b16 %v1425, %v1423
    %v1540 = vpack.c.b16 %v1428, %v1426
    %v1541 = vpack.c.b16 %v1429, %v1427
    %v1542 = vpack.c.b16 %v1432, %v1430
    %v1543 = vpack.c.b16 %v1433, %v1431
    %v1544 = vpack.c.b16 %v1436, %v1434
    %v1545 = vpack.c.b16 %v1437, %v1435
    %v1546 = vpack.c.b16 %v1440, %v1438
    %v1547 = vpack.c.b16 %v1441, %v1439
    %v1548 = vpack.c.b16 %v1444, %v1442
    %v1549 = vpack.c.b16 %v1445, %v1443
    %v1550 = vpack.c.b16 %v1448, %v1446
    %v1551 = vpack.c.b16 %v1449, %v1447
    %v1552 = vpack.c.b16 %v1452, %v1450
    %v1553 = vpack.c.b16 %v1453, %v1451
    %v1554 = vpack.c.b16 %v1456, %v1454
    %v1555 = vpack.c.b16 %v1457, %v1455
    %v1556 = vpack.c.b16 %v1460, %v1458
    %v1557 = vpack.c.b16 %v1461, %v1459
    %v1558 = vpack.c.b16 %v1464, %v1462
    %v1559 = vpack.c.b16 %v1465, %v1463
    %v1560 = vpack.c.b16 %v1468, %v1466
    %v1561 = vpack.c.b16 %v1469, %v1467
    %v1562 = vpack.c.b16 %v1472, %v1470
    %v1563 = vpack.c.b16 %v1473, %v1471
    %v1564 = vpack.c.b16 %v1476, %v1474
    %v1565 = vpack.c.b16 %v1477, %v1475
    %v1566 = vpack.c.b16 %v1480, %v1478
    %v1567 = vpack.c.b16 %v1481, %v1479
    %v1568 = vpack.c.b16 %v1484, %v1482
    %v1569 = vpack.c.b16 %v1485, %v1483
    %v1570 = vpack.c.b16 %v1488, %v1486
    %v1571 = vpack.c.b16 %v1489, %v1487
    %v1572 = vpack.c.b16 %v1492, %v1490
    %v1573 = vpack.c.b16 %v1493, %v1491
    %v1574 = vpack.c.b16 %v1496, %v1494
    %v1575 = vpack.c.b16 %v1497, %v1495
    %v1576 = vpack.c.b16 %v1500, %v1498
    %v1577 = vpack.c.b16 %v1501, %v1499
    %v1578 = vpack.c.b16 %v1504, %v1502
    %v1579 = vpack.c.b16 %v1505, %v1503
    %v1580 = vpack.c.b16 %v1508, %v1506
    %v1581 = vpack.c.b16 %v1509, %v1507
    %v1582 = vpack.c.b16 %v1512, %v1510
    %v1583 = vpack.c.b16 %v1513, %v1511
    %v1584 = vpack.c.b16 %v1516, %v1514
    %v1585 = vpack.c.b16 %v1517, %v1515
    %v1586 = vpack.c.b16 %v1520, %v1518
    %v1587 = vpack.c.b16 %v1521, %v1519
    %v1588 = vpack.c.b16 %v1524, %v1522
    %v1589 = vpack.c.b16 %v1525, %v1523
    %1654 = vmatprep.subr.bf16.mxu0 %v1541
    %1655 = vmatpush1.bf16.msra.mxu0 %v1540
    %1656 = vmatprep.subr.bf16.mxu0 %v1539
    %1657 = vmatpush1.bf16.msra.mxu0 %v1538
    %1658 = vmatprep.subr.bf16.mxu0 %v1537
    %1659 = vmatpush1.bf16.msra.mxu0 %v1536
    %1660 = vmatprep.subr.bf16.mxu0 %v1535
    %1661 = vmatpush1.bf16.msra.mxu0 %v1534
    %1662 = vmatprep.subr.bf16.mxu0 %v1533
    %1663 = vmatpush1.bf16.msra.mxu0 %v1532
    %1664 = vmatprep.subr.bf16.mxu0 %v1531
    %1665 = vmatpush1.bf16.msra.mxu0 %v1530
    %1666 = vmatprep.subr.bf16.mxu0 %v1529
    %1667 = vmatpush1.bf16.msra.mxu0 %v1528
    %1668 = vmatprep.subr.bf16.mxu0 %v1527
    %1669 = vmatpush1.bf16.msra.mxu0 %v1526
    %1670 = vmatprep.subr.bf16.mxu0 %v1557
    %1671 = vmatpush2.bf16.msra.mxu0 %v1556
    %1672 = vmatprep.subr.bf16.mxu0 %v1555
    %1673 = vmatpush2.bf16.msra.mxu0 %v1554
    %1674 = vmatprep.subr.bf16.mxu0 %v1553
    %1675 = vmatpush2.bf16.msra.mxu0 %v1552
    %1676 = vmatprep.subr.bf16.mxu0 %v1551
    %1677 = vmatpush2.bf16.msra.mxu0 %v1550
    %1678 = vmatprep.subr.bf16.mxu0 %v1549
    %1679 = vmatpush2.bf16.msra.mxu0 %v1548
    %1680 = vmatprep.subr.bf16.mxu0 %v1547
    %1681 = vmatpush2.bf16.msra.mxu0 %v1546
    %1682 = vmatprep.subr.bf16.mxu0 %v1545
    %1683 = vmatpush2.bf16.msra.mxu0 %v1544
    %1684 = vmatprep.subr.bf16.mxu0 %v1543
    %1685 = vmatpush2.bf16.msra.mxu0 %v1542
    %1686 = vmatprep.mubr.bf16.mxu0 %v1255
    %1687 = vmatmul.mubr.bf16.gmra.mxu0 %v1254
    %v1688 = vpop.f32.mrf.mxu0
    %v1689 = vadd.f32 %v1327, %v1688
    %v1690 = vpop.f32.mrf.mxu0
    %v1691 = vadd.f32 %v1331, %v1690
    %v1692 = vpop.f32.mrf.mxu0
    %v1693 = vpop.f32.mrf.mxu0
    %1694 = vdwg.mxu0
    %1695 = vmatprep.subr.bf16.mxu0 %v1573
    %1696 = vmatpush1.bf16.msra.mxu0 %v1572
    %1697 = vmatprep.subr.bf16.mxu0 %v1571
    %1698 = vmatpush1.bf16.msra.mxu0 %v1570
    %1699 = vmatprep.subr.bf16.mxu0 %v1569
    %1700 = vmatpush1.bf16.msra.mxu0 %v1568
    %1701 = vmatprep.subr.bf16.mxu0 %v1567
    %1702 = vmatpush1.bf16.msra.mxu0 %v1566
    %1703 = vmatprep.subr.bf16.mxu0 %v1565
    %1704 = vmatpush1.bf16.msra.mxu0 %v1564
    %1705 = vmatprep.subr.bf16.mxu0 %v1563
    %1706 = vmatpush1.bf16.msra.mxu0 %v1562
    %1707 = vmatprep.subr.bf16.mxu0 %v1561
    %1708 = vmatpush1.bf16.msra.mxu0 %v1560
    %1709 = vmatprep.subr.bf16.mxu0 %v1559
    %1710 = vmatpush1.bf16.msra.mxu0 %v1558
    %1711 = vmatprep.subr.bf16.mxu0 %v1589
    %1712 = vmatpush2.bf16.msra.mxu0 %v1588
    %1713 = vmatprep.subr.bf16.mxu0 %v1587
    %1714 = vmatpush2.bf16.msra.mxu0 %v1586
    %1715 = vmatprep.subr.bf16.mxu0 %v1585
    %1716 = vmatpush2.bf16.msra.mxu0 %v1584
    %1717 = vmatprep.subr.bf16.mxu0 %v1583
    %1718 = vmatpush2.bf16.msra.mxu0 %v1582
    %1719 = vmatprep.subr.bf16.mxu0 %v1581
    %1720 = vmatpush2.bf16.msra.mxu0 %v1580
    %1721 = vmatprep.subr.bf16.mxu0 %v1579
    %1722 = vmatpush2.bf16.msra.mxu0 %v1578
    %1723 = vmatprep.subr.bf16.mxu0 %v1577
    %1724 = vmatpush2.bf16.msra.mxu0 %v1576
    %1725 = vmatprep.subr.bf16.mxu0 %v1575
    %1726 = vmatpush2.bf16.msra.mxu0 %v1574
    %1727 = vmatprep.mubr.bf16.mxu0 %v1257
    %1728 = vmatmul.mubr.bf16.gmra.mxu0 %v1256
    %v1729 = vpop.f32.mrf.mxu0
    %v1730 = vadd.f32 %v1689, %v1729
    %v1731 = vpop.f32.mrf.mxu0
    %v1732 = vadd.f32 %v1691, %v1731
    %v1733 = vpop.f32.mrf.mxu0
    %v1734 = vpop.f32.mrf.mxu0
    %1735 = vdwg.mxu0
    %v1736 = vmax.f32 %v1730, 0.0
    %v1737 = vmax.f32 %v1732, 0.0
    %v1738 = vpack.c.bf16 %v1736, %v1736
    %v1739 = vpack.c.bf16 %v1737, %v1737
    %v1740 = vld [vmem:[#allocation11] sm:$0xff]
    %v1741 = vld [vmem:[#allocation11 + $0x8] sm:$0xff]
    %v1742 = vld [vmem:[#allocation11 + $0x10] sm:$0xff]
    %v1743 = vld [vmem:[#allocation11 + $0x18] sm:$0xff]
    %v1744 = vld [vmem:[#allocation11 + $0x20] sm:$0xff]
    %v1745 = vld [vmem:[#allocation11 + $0x28] sm:$0xff]
    %v1746 = vld [vmem:[#allocation11 + $0x30] sm:$0xff]
    %v1747 = vld [vmem:[#allocation11 + $0x38] sm:$0xff]
    %v1748 = vld [vmem:[#allocation11 + $0x40] sm:$0xff]
    %v1749 = vld [vmem:[#allocation11 + $0x48] sm:$0xff]
    %v1750 = vld [vmem:[#allocation11 + $0x50] sm:$0xff]
    %v1751 = vld [vmem:[#allocation11 + $0x58] sm:$0xff]
    %v1752 = vld [vmem:[#allocation11 + $0x60] sm:$0xff]
    %v1753 = vld [vmem:[#allocation11 + $0x68] sm:$0xff]
    %v1754 = vld [vmem:[#allocation11 + $0x70] sm:$0xff]
    %v1755 = vld [vmem:[#allocation11 + $0x78] sm:$0xff]
    %v1756 = vld [vmem:[#allocation11 + $0x80] sm:$0xff]
    %v1757 = vld [vmem:[#allocation11 + $0x88] sm:$0xff]
    %v1758 = vld [vmem:[#allocation11 + $0x90] sm:$0xff]
    %v1759 = vld [vmem:[#allocation11 + $0x98] sm:$0xff]
    %v1760 = vld [vmem:[#allocation11 + $0xa0] sm:$0xff]
    %v1761 = vld [vmem:[#allocation11 + $0xa8] sm:$0xff]
    %v1762 = vld [vmem:[#allocation11 + $0xb0] sm:$0xff]
    %v1763 = vld [vmem:[#allocation11 + $0xb8] sm:$0xff]
    %v1764 = vld [vmem:[#allocation11 + $0xc0] sm:$0xff]
    %v1765 = vld [vmem:[#allocation11 + $0xc8] sm:$0xff]
    %v1766 = vld [vmem:[#allocation11 + $0xd0] sm:$0xff]
    %v1767 = vld [vmem:[#allocation11 + $0xd8] sm:$0xff]
    %v1768 = vld [vmem:[#allocation11 + $0xe0] sm:$0xff]
    %v1769 = vld [vmem:[#allocation11 + $0xe8] sm:$0xff]
    %v1770 = vld [vmem:[#allocation11 + $0xf0] sm:$0xff]
    %v1771 = vld [vmem:[#allocation11 + $0xf8] sm:$0xff]
    %v1772 = vld [vmem:[#allocation11 + $0x100] sm:$0xff]
    %v1773 = vld [vmem:[#allocation11 + $0x108] sm:$0xff]
    %v1774 = vld [vmem:[#allocation11 + $0x110] sm:$0xff]
    %v1775 = vld [vmem:[#allocation11 + $0x118] sm:$0xff]
    %v1776 = vld [vmem:[#allocation11 + $0x120] sm:$0xff]
    %v1777 = vld [vmem:[#allocation11 + $0x128] sm:$0xff]
    %v1778 = vld [vmem:[#allocation11 + $0x130] sm:$0xff]
    %v1779 = vld [vmem:[#allocation11 + $0x138] sm:$0xff]
    %v1780 = vld [vmem:[#allocation11 + $0x140] sm:$0xff]
    %v1781 = vld [vmem:[#allocation11 + $0x148] sm:$0xff]
    %v1782 = vld [vmem:[#allocation11 + $0x150] sm:$0xff]
    %v1783 = vld [vmem:[#allocation11 + $0x158] sm:$0xff]
    %v1784 = vld [vmem:[#allocation11 + $0x160] sm:$0xff]
    %v1785 = vld [vmem:[#allocation11 + $0x168] sm:$0xff]
    %v1786 = vld [vmem:[#allocation11 + $0x170] sm:$0xff]
    %v1787 = vld [vmem:[#allocation11 + $0x178] sm:$0xff]
    %v1788 = vld [vmem:[#allocation11 + $0x180] sm:$0xff]
    %v1789 = vld [vmem:[#allocation11 + $0x188] sm:$0xff]
    %v1790 = vld [vmem:[#allocation11 + $0x190] sm:$0xff]
    %v1791 = vld [vmem:[#allocation11 + $0x198] sm:$0xff]
    %v1792 = vld [vmem:[#allocation11 + $0x1a0] sm:$0xff]
    %v1793 = vld [vmem:[#allocation11 + $0x1a8] sm:$0xff]
    %v1794 = vld [vmem:[#allocation11 + $0x1b0] sm:$0xff]
    %v1795 = vld [vmem:[#allocation11 + $0x1b8] sm:$0xff]
    %v1796 = vld [vmem:[#allocation11 + $0x1c0] sm:$0xff]
    %v1797 = vld [vmem:[#allocation11 + $0x1c8] sm:$0xff]
    %v1798 = vld [vmem:[#allocation11 + $0x1d0] sm:$0xff]
    %v1799 = vld [vmem:[#allocation11 + $0x1d8] sm:$0xff]
    %v1800 = vld [vmem:[#allocation11 + $0x1e0] sm:$0xff]
    %v1801 = vld [vmem:[#allocation11 + $0x1e8] sm:$0xff]
    %v1802 = vld [vmem:[#allocation11 + $0x1f0] sm:$0xff]
    %v1803 = vld [vmem:[#allocation11 + $0x1f8] sm:$0xff]
    %v1804 = vld [vmem:[%s8] sm:$0xf]
    %v1806 = vlaneseq
    %v1807 = vshrl.u32 %v1806, 7
    %v1808 = vsub.s32 0, %v1807
    %v1809 = vrot.slane %v1804, %v1808
    %v1810 = vlaneseq
    %v1811 = vshrl.u32 %v1810, 7
    %v1812 = vsub.s32 1, %v1811
    %v1813 = vrot.slane %v1804, %v1812
    %v1814 = vlaneseq
    %v1815 = vshrl.u32 %v1814, 7
    %v1816 = vsub.s32 2, %v1815
    %v1817 = vrot.slane %v1804, %v1816
    %v1818 = vlaneseq
    %v1819 = vshrl.u32 %v1818, 7
    %v1820 = vsub.s32 3, %v1819
    %v1821 = vrot.slane %v1804, %v1820
    %v1890 = vunpack.c.l.b16 %v1740
    %v1891 = vunpack.c.h.b16 %v1740
    %v1892 = vunpack.c.l.b16 %v1741
    %v1893 = vunpack.c.h.b16 %v1741
    %v1894 = vunpack.c.l.b16 %v1742
    %v1895 = vunpack.c.h.b16 %v1742
    %v1896 = vunpack.c.l.b16 %v1743
    %v1897 = vunpack.c.h.b16 %v1743
    %v1898 = vunpack.c.l.b16 %v1744
    %v1899 = vunpack.c.h.b16 %v1744
    %v1900 = vunpack.c.l.b16 %v1745
    %v1901 = vunpack.c.h.b16 %v1745
    %v1902 = vunpack.c.l.b16 %v1746
    %v1903 = vunpack.c.h.b16 %v1746
    %v1904 = vunpack.c.l.b16 %v1747
    %v1905 = vunpack.c.h.b16 %v1747
    %v1906 = vunpack.c.l.b16 %v1748
    %v1907 = vunpack.c.h.b16 %v1748
    %v1908 = vunpack.c.l.b16 %v1749
    %v1909 = vunpack.c.h.b16 %v1749
    %v1910 = vunpack.c.l.b16 %v1750
    %v1911 = vunpack.c.h.b16 %v1750
    %v1912 = vunpack.c.l.b16 %v1751
    %v1913 = vunpack.c.h.b16 %v1751
    %v1914 = vunpack.c.l.b16 %v1752
    %v1915 = vunpack.c.h.b16 %v1752
    %v1916 = vunpack.c.l.b16 %v1753
    %v1917 = vunpack.c.h.b16 %v1753
    %v1918 = vunpack.c.l.b16 %v1754
    %v1919 = vunpack.c.h.b16 %v1754
    %v1920 = vunpack.c.l.b16 %v1755
    %v1921 = vunpack.c.h.b16 %v1755
    %v1922 = vunpack.c.l.b16 %v1756
    %v1923 = vunpack.c.h.b16 %v1756
    %v1924 = vunpack.c.l.b16 %v1757
    %v1925 = vunpack.c.h.b16 %v1757
    %v1926 = vunpack.c.l.b16 %v1758
    %v1927 = vunpack.c.h.b16 %v1758
    %v1928 = vunpack.c.l.b16 %v1759
    %v1929 = vunpack.c.h.b16 %v1759
    %v1930 = vunpack.c.l.b16 %v1760
    %v1931 = vunpack.c.h.b16 %v1760
    %v1932 = vunpack.c.l.b16 %v1761
    %v1933 = vunpack.c.h.b16 %v1761
    %v1934 = vunpack.c.l.b16 %v1762
    %v1935 = vunpack.c.h.b16 %v1762
    %v1936 = vunpack.c.l.b16 %v1763
    %v1937 = vunpack.c.h.b16 %v1763
    %v1938 = vunpack.c.l.b16 %v1764
    %v1939 = vunpack.c.h.b16 %v1764
    %v1940 = vunpack.c.l.b16 %v1765
    %v1941 = vunpack.c.h.b16 %v1765
    %v1942 = vunpack.c.l.b16 %v1766
    %v1943 = vunpack.c.h.b16 %v1766
    %v1944 = vunpack.c.l.b16 %v1767
    %v1945 = vunpack.c.h.b16 %v1767
    %v1946 = vunpack.c.l.b16 %v1768
    %v1947 = vunpack.c.h.b16 %v1768
    %v1948 = vunpack.c.l.b16 %v1769
    %v1949 = vunpack.c.h.b16 %v1769
    %v1950 = vunpack.c.l.b16 %v1770
    %v1951 = vunpack.c.h.b16 %v1770
    %v1952 = vunpack.c.l.b16 %v1771
    %v1953 = vunpack.c.h.b16 %v1771
    %v1954 = vunpack.c.l.b16 %v1772
    %v1955 = vunpack.c.h.b16 %v1772
    %v1956 = vunpack.c.l.b16 %v1773
    %v1957 = vunpack.c.h.b16 %v1773
    %v1958 = vunpack.c.l.b16 %v1774
    %v1959 = vunpack.c.h.b16 %v1774
    %v1960 = vunpack.c.l.b16 %v1775
    %v1961 = vunpack.c.h.b16 %v1775
    %v1962 = vunpack.c.l.b16 %v1776
    %v1963 = vunpack.c.h.b16 %v1776
    %v1964 = vunpack.c.l.b16 %v1777
    %v1965 = vunpack.c.h.b16 %v1777
    %v1966 = vunpack.c.l.b16 %v1778
    %v1967 = vunpack.c.h.b16 %v1778
    %v1968 = vunpack.c.l.b16 %v1779
    %v1969 = vunpack.c.h.b16 %v1779
    %v1970 = vunpack.c.l.b16 %v1780
    %v1971 = vunpack.c.h.b16 %v1780
    %v1972 = vunpack.c.l.b16 %v1781
    %v1973 = vunpack.c.h.b16 %v1781
    %v1974 = vunpack.c.l.b16 %v1782
    %v1975 = vunpack.c.h.b16 %v1782
    %v1976 = vunpack.c.l.b16 %v1783
    %v1977 = vunpack.c.h.b16 %v1783
    %v1978 = vunpack.c.l.b16 %v1784
    %v1979 = vunpack.c.h.b16 %v1784
    %v1980 = vunpack.c.l.b16 %v1785
    %v1981 = vunpack.c.h.b16 %v1785
    %v1982 = vunpack.c.l.b16 %v1786
    %v1983 = vunpack.c.h.b16 %v1786
    %v1984 = vunpack.c.l.b16 %v1787
    %v1985 = vunpack.c.h.b16 %v1787
    %v1986 = vunpack.c.l.b16 %v1788
    %v1987 = vunpack.c.h.b16 %v1788
    %v1988 = vunpack.c.l.b16 %v1789
    %v1989 = vunpack.c.h.b16 %v1789
    %v1990 = vunpack.c.l.b16 %v1790
    %v1991 = vunpack.c.h.b16 %v1790
    %v1992 = vunpack.c.l.b16 %v1791
    %v1993 = vunpack.c.h.b16 %v1791
    %v1994 = vunpack.c.l.b16 %v1792
    %v1995 = vunpack.c.h.b16 %v1792
    %v1996 = vunpack.c.l.b16 %v1793
    %v1997 = vunpack.c.h.b16 %v1793
    %v1998 = vunpack.c.l.b16 %v1794
    %v1999 = vunpack.c.h.b16 %v1794
    %v2000 = vunpack.c.l.b16 %v1795
    %v2001 = vunpack.c.h.b16 %v1795
    %v2002 = vunpack.c.l.b16 %v1796
    %v2003 = vunpack.c.h.b16 %v1796
    %v2004 = vunpack.c.l.b16 %v1797
    %v2005 = vunpack.c.h.b16 %v1797
    %v2006 = vunpack.c.l.b16 %v1798
    %v2007 = vunpack.c.h.b16 %v1798
    %v2008 = vunpack.c.l.b16 %v1799
    %v2009 = vunpack.c.h.b16 %v1799
    %v2010 = vunpack.c.l.b16 %v1800
    %v2011 = vunpack.c.h.b16 %v1800
    %v2012 = vunpack.c.l.b16 %v1801
    %v2013 = vunpack.c.h.b16 %v1801
    %v2014 = vunpack.c.l.b16 %v1802
    %v2015 = vunpack.c.h.b16 %v1802
    %v2016 = vunpack.c.l.b16 %v1803
    %v2017 = vunpack.c.h.b16 %v1803
    %v2018 = vpack.c.b16 %v1894, %v1890
    %v2019 = vpack.c.b16 %v1895, %v1891
    %v2020 = vpack.c.b16 %v1896, %v1892
    %v2021 = vpack.c.b16 %v1897, %v1893
    %v2022 = vpack.c.b16 %v1902, %v1898
    %v2023 = vpack.c.b16 %v1903, %v1899
    %v2024 = vpack.c.b16 %v1904, %v1900
    %v2025 = vpack.c.b16 %v1905, %v1901
    %v2026 = vpack.c.b16 %v1910, %v1906
    %v2027 = vpack.c.b16 %v1911, %v1907
    %v2028 = vpack.c.b16 %v1912, %v1908
    %v2029 = vpack.c.b16 %v1913, %v1909
    %v2030 = vpack.c.b16 %v1918, %v1914
    %v2031 = vpack.c.b16 %v1919, %v1915
    %v2032 = vpack.c.b16 %v1920, %v1916
    %v2033 = vpack.c.b16 %v1921, %v1917
    %v2034 = vpack.c.b16 %v1926, %v1922
    %v2035 = vpack.c.b16 %v1927, %v1923
    %v2036 = vpack.c.b16 %v1928, %v1924
    %v2037 = vpack.c.b16 %v1929, %v1925
    %v2038 = vpack.c.b16 %v1934, %v1930
    %v2039 = vpack.c.b16 %v1935, %v1931
    %v2040 = vpack.c.b16 %v1936, %v1932
    %v2041 = vpack.c.b16 %v1937, %v1933
    %v2042 = vpack.c.b16 %v1942, %v1938
    %v2043 = vpack.c.b16 %v1943, %v1939
    %v2044 = vpack.c.b16 %v1944, %v1940
    %v2045 = vpack.c.b16 %v1945, %v1941
    %v2046 = vpack.c.b16 %v1950, %v1946
    %v2047 = vpack.c.b16 %v1951, %v1947
    %v2048 = vpack.c.b16 %v1952, %v1948
    %v2049 = vpack.c.b16 %v1953, %v1949
    %v2050 = vpack.c.b16 %v1958, %v1954
    %v2051 = vpack.c.b16 %v1959, %v1955
    %v2052 = vpack.c.b16 %v1960, %v1956
    %v2053 = vpack.c.b16 %v1961, %v1957
    %v2054 = vpack.c.b16 %v1966, %v1962
    %v2055 = vpack.c.b16 %v1967, %v1963
    %v2056 = vpack.c.b16 %v1968, %v1964
    %v2057 = vpack.c.b16 %v1969, %v1965
    %v2058 = vpack.c.b16 %v1974, %v1970
    %v2059 = vpack.c.b16 %v1975, %v1971
    %v2060 = vpack.c.b16 %v1976, %v1972
    %v2061 = vpack.c.b16 %v1977, %v1973
    %v2062 = vpack.c.b16 %v1982, %v1978
    %v2063 = vpack.c.b16 %v1983, %v1979
    %v2064 = vpack.c.b16 %v1984, %v1980
    %v2065 = vpack.c.b16 %v1985, %v1981
    %v2066 = vpack.c.b16 %v1990, %v1986
    %v2067 = vpack.c.b16 %v1991, %v1987
    %v2068 = vpack.c.b16 %v1992, %v1988
    %v2069 = vpack.c.b16 %v1993, %v1989
    %v2070 = vpack.c.b16 %v1998, %v1994
    %v2071 = vpack.c.b16 %v1999, %v1995
    %v2072 = vpack.c.b16 %v2000, %v1996
    %v2073 = vpack.c.b16 %v2001, %v1997
    %v2074 = vpack.c.b16 %v2006, %v2002
    %v2075 = vpack.c.b16 %v2007, %v2003
    %v2076 = vpack.c.b16 %v2008, %v2004
    %v2077 = vpack.c.b16 %v2009, %v2005
    %v2078 = vpack.c.b16 %v2014, %v2010
    %v2079 = vpack.c.b16 %v2015, %v2011
    %v2080 = vpack.c.b16 %v2016, %v2012
    %v2081 = vpack.c.b16 %v2017, %v2013
    %2146 = vmatprep.subr.bf16.mxu0 %v2047
    %2147 = vmatpush1.bf16.msra.mxu0 %v2046
    %2148 = vmatprep.subr.bf16.mxu0 %v2043
    %2149 = vmatpush1.bf16.msra.mxu0 %v2042
    %2150 = vmatprep.subr.bf16.mxu0 %v2039
    %2151 = vmatpush1.bf16.msra.mxu0 %v2038
    %2152 = vmatprep.subr.bf16.mxu0 %v2035
    %2153 = vmatpush1.bf16.msra.mxu0 %v2034
    %2154 = vmatprep.subr.bf16.mxu0 %v2031
    %2155 = vmatpush1.bf16.msra.mxu0 %v2030
    %2156 = vmatprep.subr.bf16.mxu0 %v2027
    %2157 = vmatpush1.bf16.msra.mxu0 %v2026
    %2158 = vmatprep.subr.bf16.mxu0 %v2023
    %2159 = vmatpush1.bf16.msra.mxu0 %v2022
    %2160 = vmatprep.subr.bf16.mxu0 %v2019
    %2161 = vmatpush1.bf16.msra.mxu0 %v2018
    %2162 = vmatprep.subr.bf16.mxu0 %v2079
    %2163 = vmatpush2.bf16.msra.mxu0 %v2078
    %2164 = vmatprep.subr.bf16.mxu0 %v2075
    %2165 = vmatpush2.bf16.msra.mxu0 %v2074
    %2166 = vmatprep.subr.bf16.mxu0 %v2071
    %2167 = vmatpush2.bf16.msra.mxu0 %v2070
    %2168 = vmatprep.subr.bf16.mxu0 %v2067
    %2169 = vmatpush2.bf16.msra.mxu0 %v2066
    %2170 = vmatprep.subr.bf16.mxu0 %v2063
    %2171 = vmatpush2.bf16.msra.mxu0 %v2062
    %2172 = vmatprep.subr.bf16.mxu0 %v2059
    %2173 = vmatpush2.bf16.msra.mxu0 %v2058
    %2174 = vmatprep.subr.bf16.mxu0 %v2055
    %2175 = vmatpush2.bf16.msra.mxu0 %v2054
    %2176 = vmatprep.subr.bf16.mxu0 %v2051
    %2177 = vmatpush2.bf16.msra.mxu0 %v2050
    %2178 = vmatprep.mubr.bf16.mxu0 %v1739
    %2179 = vmatmul.mubr.bf16.gmra.mxu0 %v1738
    %v2180 = vpop.f32.mrf.mxu0
    %v2181 = vadd.f32 %v1809, %v2180
    %v2182 = vpop.f32.mrf.mxu0
    %v2183 = vadd.f32 %v1813, %v2182
    %v2184 = vpop.f32.mrf.mxu0
    %v2185 = vpop.f32.mrf.mxu0
    %2186 = vdwg.mxu0
    %2187 = vmatprep.subr.bf16.mxu0 %v2049
    %2188 = vmatpush1.bf16.msra.mxu0 %v2048
    %2189 = vmatprep.subr.bf16.mxu0 %v2045
    %2190 = vmatpush1.bf16.msra.mxu0 %v2044
    %2191 = vmatprep.subr.bf16.mxu0 %v2041
    %2192 = vmatpush1.bf16.msra.mxu0 %v2040
    %2193 = vmatprep.subr.bf16.mxu0 %v2037
    %2194 = vmatpush1.bf16.msra.mxu0 %v2036
    %2195 = vmatprep.subr.bf16.mxu0 %v2033
    %2196 = vmatpush1.bf16.msra.mxu0 %v2032
    %2197 = vmatprep.subr.bf16.mxu0 %v2029
    %2198 = vmatpush1.bf16.msra.mxu0 %v2028
    %2199 = vmatprep.subr.bf16.mxu0 %v2025
    %2200 = vmatpush1.bf16.msra.mxu0 %v2024
    %2201 = vmatprep.subr.bf16.mxu0 %v2021
    %2202 = vmatpush1.bf16.msra.mxu0 %v2020
    %2203 = vmatprep.subr.bf16.mxu0 %v2081
    %2204 = vmatpush2.bf16.msra.mxu0 %v2080
    %2205 = vmatprep.subr.bf16.mxu0 %v2077
    %2206 = vmatpush2.bf16.msra.mxu0 %v2076
    %2207 = vmatprep.subr.bf16.mxu0 %v2073
    %2208 = vmatpush2.bf16.msra.mxu0 %v2072
    %2209 = vmatprep.subr.bf16.mxu0 %v2069
    %2210 = vmatpush2.bf16.msra.mxu0 %v2068
    %2211 = vmatprep.subr.bf16.mxu0 %v2065
    %2212 = vmatpush2.bf16.msra.mxu0 %v2064
    %2213 = vmatprep.subr.bf16.mxu0 %v2061
    %2214 = vmatpush2.bf16.msra.mxu0 %v2060
    %2215 = vmatprep.subr.bf16.mxu0 %v2057
    %2216 = vmatpush2.bf16.msra.mxu0 %v2056
    %2217 = vmatprep.subr.bf16.mxu0 %v2053
    %2218 = vmatpush2.bf16.msra.mxu0 %v2052
    %2219 = vmatprep.mubr.bf16.mxu0 %v1739
    %2220 = vmatmul.mubr.bf16.gmra.mxu0 %v1738
    %v2221 = vpop.f32.mrf.mxu0
    %v2222 = vadd.f32 %v1817, %v2221
    %v2223 = vpop.f32.mrf.mxu0
    %v2224 = vadd.f32 %v1821, %v2223
    %v2225 = vpop.f32.mrf.mxu0
    %v2226 = vpop.f32.mrf.mxu0
    %2227 = vdwg.mxu0
    %v2228 = vmax.f32 %v2181, 0.0
    %v2229 = vmax.f32 %v2183, 0.0
    %v2230 = vtanh.pop %v2222
    %v2231 = vtanh.pop %v2224
    %v2232 = vpack.c.bf16 %v2228, %v2228
    %v2233 = vpack.c.bf16 %v2229, %v2229
    %v2234 = vpack.c.bf16 %v2230, %v2230
    %v2235 = vpack.c.bf16 %v2231, %v2231
    %v2236 = vld [vmem:[#allocation13] sm:$0xf]
    %v2237 = vld [vmem:[#allocation13 + $0x4] sm:$0xf]
    %v2238 = vld [vmem:[#allocation13 + $0x8] sm:$0xf]
    %v2239 = vld [vmem:[#allocation13 + $0xc] sm:$0xf]
    %v2240 = vld [vmem:[#allocation13 + $0x10] sm:$0xf]
    %v2241 = vld [vmem:[#allocation13 + $0x14] sm:$0xf]
    %v2242 = vld [vmem:[#allocation13 + $0x18] sm:$0xf]
    %v2243 = vld [vmem:[#allocation13 + $0x1c] sm:$0xf]
    %v2244 = vld [vmem:[#allocation13 + $0x20] sm:$0xf]
    %v2245 = vld [vmem:[#allocation13 + $0x24] sm:$0xf]
    %v2246 = vld [vmem:[#allocation13 + $0x28] sm:$0xf]
    %v2247 = vld [vmem:[#allocation13 + $0x2c] sm:$0xf]
    %v2248 = vld [vmem:[#allocation13 + $0x30] sm:$0xf]
    %v2249 = vld [vmem:[#allocation13 + $0x34] sm:$0xf]
    %v2250 = vld [vmem:[#allocation13 + $0x38] sm:$0xf]
    %v2251 = vld [vmem:[#allocation13 + $0x3c] sm:$0xf]
    %v2252 = vld [vmem:[#allocation13 + $0x40] sm:$0xf]
    %v2253 = vld [vmem:[#allocation13 + $0x44] sm:$0xf]
    %v2254 = vld [vmem:[#allocation13 + $0x48] sm:$0xf]
    %v2255 = vld [vmem:[#allocation13 + $0x4c] sm:$0xf]
    %v2256 = vld [vmem:[#allocation13 + $0x50] sm:$0xf]
    %v2257 = vld [vmem:[#allocation13 + $0x54] sm:$0xf]
    %v2258 = vld [vmem:[#allocation13 + $0x58] sm:$0xf]
    %v2259 = vld [vmem:[#allocation13 + $0x5c] sm:$0xf]
    %v2260 = vld [vmem:[#allocation13 + $0x60] sm:$0xf]
    %v2261 = vld [vmem:[#allocation13 + $0x64] sm:$0xf]
    %v2262 = vld [vmem:[#allocation13 + $0x68] sm:$0xf]
    %v2263 = vld [vmem:[#allocation13 + $0x6c] sm:$0xf]
    %v2264 = vld [vmem:[#allocation13 + $0x70] sm:$0xf]
    %v2265 = vld [vmem:[#allocation13 + $0x74] sm:$0xf]
    %v2266 = vld [vmem:[#allocation13 + $0x78] sm:$0xf]
    %v2267 = vld [vmem:[#allocation13 + $0x7c] sm:$0xf]
    %v2268 = vld [vmem:[#allocation13 + $0x80] sm:$0xf]
    %v2269 = vld [vmem:[#allocation13 + $0x84] sm:$0xf]
    %v2270 = vld [vmem:[#allocation13 + $0x88] sm:$0xf]
    %v2271 = vld [vmem:[#allocation13 + $0x8c] sm:$0xf]
    %v2272 = vld [vmem:[#allocation13 + $0x90] sm:$0xf]
    %v2273 = vld [vmem:[#allocation13 + $0x94] sm:$0xf]
    %v2274 = vld [vmem:[#allocation13 + $0x98] sm:$0xf]
    %v2275 = vld [vmem:[#allocation13 + $0x9c] sm:$0xf]
    %v2276 = vld [vmem:[#allocation13 + $0xa0] sm:$0xf]
    %v2277 = vld [vmem:[#allocation13 + $0xa4] sm:$0xf]
    %v2278 = vld [vmem:[#allocation13 + $0xa8] sm:$0xf]
    %v2279 = vld [vmem:[#allocation13 + $0xac] sm:$0xf]
    %v2280 = vld [vmem:[#allocation13 + $0xb0] sm:$0xf]
    %v2281 = vld [vmem:[#allocation13 + $0xb4] sm:$0xf]
    %v2282 = vld [vmem:[#allocation13 + $0xb8] sm:$0xf]
    %v2283 = vld [vmem:[#allocation13 + $0xbc] sm:$0xf]
    %v2284 = vld [vmem:[#allocation13 + $0xc0] sm:$0xf]
    %v2285 = vld [vmem:[#allocation13 + $0xc4] sm:$0xf]
    %v2286 = vld [vmem:[#allocation13 + $0xc8] sm:$0xf]
    %v2287 = vld [vmem:[#allocation13 + $0xcc] sm:$0xf]
    %v2288 = vld [vmem:[#allocation13 + $0xd0] sm:$0xf]
    %v2289 = vld [vmem:[#allocation13 + $0xd4] sm:$0xf]
    %v2290 = vld [vmem:[#allocation13 + $0xd8] sm:$0xf]
    %v2291 = vld [vmem:[#allocation13 + $0xdc] sm:$0xf]
    %v2292 = vld [vmem:[#allocation13 + $0xe0] sm:$0xf]
    %v2293 = vld [vmem:[#allocation13 + $0xe4] sm:$0xf]
    %v2294 = vld [vmem:[#allocation13 + $0xe8] sm:$0xf]
    %v2295 = vld [vmem:[#allocation13 + $0xec] sm:$0xf]
    %v2296 = vld [vmem:[#allocation13 + $0xf0] sm:$0xf]
    %v2297 = vld [vmem:[#allocation13 + $0xf4] sm:$0xf]
    %v2298 = vld [vmem:[#allocation13 + $0xf8] sm:$0xf]
    %v2299 = vld [vmem:[#allocation13 + $0xfc] sm:$0xf]
    %v2300 = vld [vmem:[%s10] sm:$0x1]
    %v2302 = vlaneseq
    %v2303 = vshrl.u32 %v2302, 7
    %v2304 = vsub.s32 0, %v2303
    %v2305 = vrot.slane %v2300, %v2304
    %v2371 = vunpack.c.l.b16 %v2236
    %v2372 = vunpack.c.l.b16 %v2237
    %v2373 = vunpack.c.l.b16 %v2238
    %v2374 = vunpack.c.l.b16 %v2239
    %v2375 = vunpack.c.l.b16 %v2240
    %v2376 = vunpack.c.l.b16 %v2241
    %v2377 = vunpack.c.l.b16 %v2242
    %v2378 = vunpack.c.l.b16 %v2243
    %v2379 = vunpack.c.l.b16 %v2244
    %v2380 = vunpack.c.l.b16 %v2245
    %v2381 = vunpack.c.l.b16 %v2246
    %v2382 = vunpack.c.l.b16 %v2247
    %v2383 = vunpack.c.l.b16 %v2248
    %v2384 = vunpack.c.l.b16 %v2249
    %v2385 = vunpack.c.l.b16 %v2250
    %v2386 = vunpack.c.l.b16 %v2251
    %v2387 = vunpack.c.l.b16 %v2252
    %v2388 = vunpack.c.l.b16 %v2253
    %v2389 = vunpack.c.l.b16 %v2254
    %v2390 = vunpack.c.l.b16 %v2255
    %v2391 = vunpack.c.l.b16 %v2256
    %v2392 = vunpack.c.l.b16 %v2257
    %v2393 = vunpack.c.l.b16 %v2258
    %v2394 = vunpack.c.l.b16 %v2259
    %v2395 = vunpack.c.l.b16 %v2260
    %v2396 = vunpack.c.l.b16 %v2261
    %v2397 = vunpack.c.l.b16 %v2262
    %v2398 = vunpack.c.l.b16 %v2263
    %v2399 = vunpack.c.l.b16 %v2264
    %v2400 = vunpack.c.l.b16 %v2265
    %v2401 = vunpack.c.l.b16 %v2266
    %v2402 = vunpack.c.l.b16 %v2267
    %v2403 = vunpack.c.l.b16 %v2268
    %v2404 = vunpack.c.l.b16 %v2269
    %v2405 = vunpack.c.l.b16 %v2270
    %v2406 = vunpack.c.l.b16 %v2271
    %v2407 = vunpack.c.l.b16 %v2272
    %v2408 = vunpack.c.l.b16 %v2273
    %v2409 = vunpack.c.l.b16 %v2274
    %v2410 = vunpack.c.l.b16 %v2275
    %v2411 = vunpack.c.l.b16 %v2276
    %v2412 = vunpack.c.l.b16 %v2277
    %v2413 = vunpack.c.l.b16 %v2278
    %v2414 = vunpack.c.l.b16 %v2279
    %v2415 = vunpack.c.l.b16 %v2280
    %v2416 = vunpack.c.l.b16 %v2281
    %v2417 = vunpack.c.l.b16 %v2282
    %v2418 = vunpack.c.l.b16 %v2283
    %v2419 = vunpack.c.l.b16 %v2284
    %v2420 = vunpack.c.l.b16 %v2285
    %v2421 = vunpack.c.l.b16 %v2286
    %v2422 = vunpack.c.l.b16 %v2287
    %v2423 = vunpack.c.l.b16 %v2288
    %v2424 = vunpack.c.l.b16 %v2289
    %v2425 = vunpack.c.l.b16 %v2290
    %v2426 = vunpack.c.l.b16 %v2291
    %v2427 = vunpack.c.l.b16 %v2292
    %v2428 = vunpack.c.l.b16 %v2293
    %v2429 = vunpack.c.l.b16 %v2294
    %v2430 = vunpack.c.l.b16 %v2295
    %v2431 = vunpack.c.l.b16 %v2296
    %v2432 = vunpack.c.l.b16 %v2297
    %v2433 = vunpack.c.l.b16 %v2298
    %v2434 = vunpack.c.l.b16 %v2299
    %v2435 = vpack.c.b16 %v2372, %v2371
    %v2436 = vpack.c.b16 %v2374, %v2373
    %v2437 = vpack.c.b16 %v2376, %v2375
    %v2438 = vpack.c.b16 %v2378, %v2377
    %v2439 = vpack.c.b16 %v2380, %v2379
    %v2440 = vpack.c.b16 %v2382, %v2381
    %v2441 = vpack.c.b16 %v2384, %v2383
    %v2442 = vpack.c.b16 %v2386, %v2385
    %v2443 = vpack.c.b16 %v2388, %v2387
    %v2444 = vpack.c.b16 %v2390, %v2389
    %v2445 = vpack.c.b16 %v2392, %v2391
    %v2446 = vpack.c.b16 %v2394, %v2393
    %v2447 = vpack.c.b16 %v2396, %v2395
    %v2448 = vpack.c.b16 %v2398, %v2397
    %v2449 = vpack.c.b16 %v2400, %v2399
    %v2450 = vpack.c.b16 %v2402, %v2401
    %v2451 = vpack.c.b16 %v2404, %v2403
    %v2452 = vpack.c.b16 %v2406, %v2405
    %v2453 = vpack.c.b16 %v2408, %v2407
    %v2454 = vpack.c.b16 %v2410, %v2409
    %v2455 = vpack.c.b16 %v2412, %v2411
    %v2456 = vpack.c.b16 %v2414, %v2413
    %v2457 = vpack.c.b16 %v2416, %v2415
    %v2458 = vpack.c.b16 %v2418, %v2417
    %v2459 = vpack.c.b16 %v2420, %v2419
    %v2460 = vpack.c.b16 %v2422, %v2421
    %v2461 = vpack.c.b16 %v2424, %v2423
    %v2462 = vpack.c.b16 %v2426, %v2425
    %v2463 = vpack.c.b16 %v2428, %v2427
    %v2464 = vpack.c.b16 %v2430, %v2429
    %v2465 = vpack.c.b16 %v2432, %v2431
    %v2466 = vpack.c.b16 %v2434, %v2433
    %2499 = vmatprep.subr.bf16.mxu0 0
    %2500 = vmatpush1.bf16.msra.mxu0 %v2442
    %2501 = vmatprep.subr.bf16.mxu0 0
    %2502 = vmatpush1.bf16.msra.mxu0 %v2441
    %2503 = vmatprep.subr.bf16.mxu0 0
    %2504 = vmatpush1.bf16.msra.mxu0 %v2440
    %2505 = vmatprep.subr.bf16.mxu0 0
    %2506 = vmatpush1.bf16.msra.mxu0 %v2439
    %2507 = vmatprep.subr.bf16.mxu0 0
    %2508 = vmatpush1.bf16.msra.mxu0 %v2438
    %2509 = vmatprep.subr.bf16.mxu0 0
    %2510 = vmatpush1.bf16.msra.mxu0 %v2437
    %2511 = vmatprep.subr.bf16.mxu0 0
    %2512 = vmatpush1.bf16.msra.mxu0 %v2436
    %2513 = vmatprep.subr.bf16.mxu0 0
    %2514 = vmatpush1.bf16.msra.mxu0 %v2435
    %2515 = vmatprep.subr.bf16.mxu0 0
    %2516 = vmatpush2.bf16.msra.mxu0 %v2450
    %2517 = vmatprep.subr.bf16.mxu0 0
    %2518 = vmatpush2.bf16.msra.mxu0 %v2449
    %2519 = vmatprep.subr.bf16.mxu0 0
    %2520 = vmatpush2.bf16.msra.mxu0 %v2448
    %2521 = vmatprep.subr.bf16.mxu0 0
    %2522 = vmatpush2.bf16.msra.mxu0 %v2447
    %2523 = vmatprep.subr.bf16.mxu0 0
    %2524 = vmatpush2.bf16.msra.mxu0 %v2446
    %2525 = vmatprep.subr.bf16.mxu0 0
    %2526 = vmatpush2.bf16.msra.mxu0 %v2445
    %2527 = vmatprep.subr.bf16.mxu0 0
    %2528 = vmatpush2.bf16.msra.mxu0 %v2444
    %2529 = vmatprep.subr.bf16.mxu0 0
    %2530 = vmatpush2.bf16.msra.mxu0 %v2443
    %2531 = vmatprep.mubr.bf16.mxu0 %v2233
    %2532 = vmatmul.mubr.bf16.gmra.mxu0 %v2232
    %v2533 = vpop.f32.mrf.mxu0
    %v2534 = vadd.f32 %v2305, %v2533
    %v2535 = vpop.f32.mrf.mxu0
    %v2536 = vpop.f32.mrf.mxu0
    %v2537 = vpop.f32.mrf.mxu0
    %2538 = vdwg.mxu0
    %2539 = vmatprep.subr.bf16.mxu0 0
    %2540 = vmatpush1.bf16.msra.mxu0 %v2458
    %2541 = vmatprep.subr.bf16.mxu0 0
    %2542 = vmatpush1.bf16.msra.mxu0 %v2457
    %2543 = vmatprep.subr.bf16.mxu0 0
    %2544 = vmatpush1.bf16.msra.mxu0 %v2456
    %2545 = vmatprep.subr.bf16.mxu0 0
    %2546 = vmatpush1.bf16.msra.mxu0 %v2455
    %2547 = vmatprep.subr.bf16.mxu0 0
    %2548 = vmatpush1.bf16.msra.mxu0 %v2454
    %2549 = vmatprep.subr.bf16.mxu0 0
    %2550 = vmatpush1.bf16.msra.mxu0 %v2453
    %2551 = vmatprep.subr.bf16.mxu0 0
    %2552 = vmatpush1.bf16.msra.mxu0 %v2452
    %2553 = vmatprep.subr.bf16.mxu0 0
    %2554 = vmatpush1.bf16.msra.mxu0 %v2451
    %2555 = vmatprep.subr.bf16.mxu0 0
    %2556 = vmatpush2.bf16.msra.mxu0 %v2466
    %2557 = vmatprep.subr.bf16.mxu0 0
    %2558 = vmatpush2.bf16.msra.mxu0 %v2465
    %2559 = vmatprep.subr.bf16.mxu0 0
    %2560 = vmatpush2.bf16.msra.mxu0 %v2464
    %2561 = vmatprep.subr.bf16.mxu0 0
    %2562 = vmatpush2.bf16.msra.mxu0 %v2463
    %2563 = vmatprep.subr.bf16.mxu0 0
    %2564 = vmatpush2.bf16.msra.mxu0 %v2462
    %2565 = vmatprep.subr.bf16.mxu0 0
    %2566 = vmatpush2.bf16.msra.mxu0 %v2461
    %2567 = vmatprep.subr.bf16.mxu0 0
    %2568 = vmatpush2.bf16.msra.mxu0 %v2460
    %2569 = vmatprep.subr.bf16.mxu0 0
    %2570 = vmatpush2.bf16.msra.mxu0 %v2459
    %2571 = vmatprep.mubr.bf16.mxu0 %v2235
    %2572 = vmatmul.mubr.bf16.gmra.mxu0 %v2234
    %v2573 = vpop.f32.mrf.mxu0
    %v2574 = vadd.f32 %v2534, %v2573
    %v2575 = vpop.f32.mrf.mxu0
    %v2576 = vpop.f32.mrf.mxu0
    %v2577 = vpop.f32.mrf.mxu0
    %2578 = vdwg.mxu0
    %v2579 = vlaneseq
    %v2580 = vand.u32 %v2579, 127
    %vm2581 = vcmp.lt.s32.totalorder %v2580, 4
    %vm2582 = vcmp.ge.s32.totalorder %v2580, 4
    %vm2583 = vcmp.lt.s32.totalorder %v2580, 12
    %vm2584 = vmand %vm2582, %vm2583
    %v2585 = vsel %vm2581, %v2574, -1e+30
    %2586 = vmax.xlane.f32.xlu0 %v2585
    %v2587 = vpop.xlane.xlu0 %2586
    %v2588 = vsub.f32 %v2585, %v2587
    %v2589 = vmul.f32 %v2588, 1.442695
    %v2590 = vpow.pop %v2589
    %v2591 = vsel %vm2581, %v2590, 0.0
    %2592 = vadd.xlane.f32.xlu0 %v2591
    %v2593 = vpop.xlane.xlu0 %2592
    %v2594 = vrcp.pop %v2593
    %v2595 = vmul.f32 %v2593, %v2594
    %v2596 = vsub.f32 2.0, %v2595
    %v2597 = vmul.f32 %v2594, %v2596
    %v2598 = vmul.f32 %v2591, %v2597
    %v2599 = vtanh.pop %v2574
    %v2600 = vadd.f32 %v2599, 1.0
    %v2601 = vmul.f32 %v2600, 0.5
    %v2602 = vsel %vm2584, %v2601, 0.0
    %v2603 = vadd.f32 %v2598, %v2602
    %2604 = vst [vmem:[#allocation14] sm:$0xff] %v2603
    // Predicated region
    $region74: #{tpu_custom_call.1} parent=1 // pred_check
      _
    $region75: #{tpu_custom_call.1} parent=1 // pred_check_branch
      %2606 = sbr.rel (0) target = $region77
    $region76: #{tpu_custom_call.1} parent=1 // pred_region
      %s2608 = ssub.s32 128, 128
      %2609 = vsyncadd [#allocation4], %s2608
      %s2611 = sshll.u32 [#allocation14], 4
      %s2612 = int_to_ptr.vmem [resolvable:$true] %s2611
      %2614 = dma.vmem_to_hbm [thread:$0]  %s2612, 128, %s11, [#allocation4]
    $region77: #{tpu_custom_call.1} parent=1 // pred_fallthru
      _
    // Predicated region
    $region78: #{tpu_custom_call.1} parent=1 // pred_check
      _
    $region79: #{tpu_custom_call.1} parent=1 // pred_check_branch
      %2616 = sbr.rel (0) target = $region81
    $region80: #{tpu_custom_call.1} parent=1 // pred_region
      %2617 = dma.done [#allocation4], 128
    $region81: #{tpu_custom_call.1} parent=1 // pred_fallthru
      _
    %2618 = vsyncpa [#allocation3], 1
    %2619 = vsyncpa [#allocation6], 1
    %2620 = vsyncpa [#allocation9], 1
    %2621 = vsyncpa [#allocation12], 1
    %2622 = vsyncpa [#allocation4], 1

</llo_original>
